<compile_context>
chip_gen: v7x
topology: tpu7x:2x2x1
jax: 0.10.0
libtpu: 0.0.40
codegen_flags: <defaults>
</compile_context>

<pallas_src>
import functools
import math

import jax
import jax.numpy as jnp
from jax.experimental import pallas as pl
from jax.experimental.pallas import tpu as pltpu

EPS = 1e-5  # LayerNorm(feature_dim, 1e-5) and the encoder-layer norms


def _layernorm(x, g, b, eps):
    mu = jnp.mean(x, axis=-1, keepdims=True)
    var = jnp.mean(jnp.square(x - mu), axis=-1, keepdims=True)  # biased, like torch
    return (x - mu) * jax.lax.rsqrt(var + eps) * g + b


# ---------------------------------------------------------------- kernel -----

def _fused_transformer_kernel(
    x_ref,
    in_w_ref, in_b_ref, out_w_ref, out_b_ref,
    l1_w_ref, l1_b_ref, l2_w_ref, l2_b_ref,
    n1_g_ref, n1_b_ref, n2_g_ref, n2_b_ref,
    ln_g_ref, ln_b_ref, k1_w_ref, k1_b_ref, k2_w_ref, k2_b_ref,
    o_ref,
    h_ref,
    *, num_heads, eps):
    """One (batch b, encoder layer l) grid step; activations resident in VMEM."""
    layer = pl.program_id(1)
    n_layers = pl.num_programs(1)
    S, F = h_ref.shape
    hd = F // num_heads
    scale = 1.0 / math.sqrt(hd)

    # Load the input slab for this batch once, at the first layer step.
    @pl.when(layer == 0)
    def _():
        h_ref[...] = x_ref[0]

    h = h_ref[...]                                               # (S, F) f32

    # ---- self-attention: packed in-projection, all heads in-kernel ---------
    qkv = jnp.dot(h.astype(jnp.bfloat16), in_w_ref[0],
                  preferred_element_type=jnp.float32) + in_b_ref[0]   # (S, 3F)
    q, k, v = qkv[:, :F], qkv[:, F:2 * F], qkv[:, 2 * F:]

    heads = []
    for hh in range(num_heads):                                  # static loop
        sl = slice(hh * hd, (hh + 1) * hd)
        qh, kh, vh = q[:, sl], k[:, sl], v[:, sl]                # (S, hd) f32
        # scores: q @ k^T (contract the head dim; tiny -> keep f32)
        s = jax.lax.dot_general(qh, kh, (((1,), (1,)), ((), ())),
                                preferred_element_type=jnp.float32) * scale
        m = jnp.max(s, axis=-1, keepdims=True)
        p = jnp.exp(s - m)
        p = p * pl.reciprocal(jnp.sum(p, axis=-1, keepdims=True), approx=True)
        heads.append(jnp.dot(p, vh, preferred_element_type=jnp.float32))
    attn = jnp.concatenate(heads, axis=-1)                       # (S, F) f32
    attn = jnp.dot(attn.astype(jnp.bfloat16), out_w_ref[0],
                   preferred_element_type=jnp.float32) + out_b_ref[0]

    h = _layernorm(h + attn, n1_g_ref[0], n1_b_ref[0], eps)      # norm1(src+attn)

    # ---- feed-forward -------------------------------------------------------
    ff = jnp.dot(h.astype(jnp.bfloat16), l1_w_ref[0],
                 preferred_element_type=jnp.float32) + l1_b_ref[0]
    ff = jnp.maximum(ff, 0.0)
    ff = jnp.dot(ff.astype(jnp.bfloat16), l2_w_ref[0],
                 preferred_element_type=jnp.float32) + l2_b_ref[0]
    h = _layernorm(h + ff, n2_g_ref[0], n2_b_ref[0], eps)        # norm2(src+ff)
    h_ref[...] = h

    # ---- fused output head on the last layer step ---------------------------
    @pl.when(layer == n_layers - 1)
    def _():
        e = _layernorm(h, ln_g_ref[...], ln_b_ref[...], eps)     # encoder final norm
        y = jnp.dot(e.astype(jnp.bfloat16), k1_w_ref[...],
                    preferred_element_type=jnp.float32) + k1_b_ref[...]
        y = jnp.maximum(y, 0.0)
        # TODO(synk): nn.Dropout(0.5) is stochastic; treated as identity (eval mode).
        y = _layernorm(y, ln_g_ref[...], ln_b_ref[...], eps)     # same layer_norm module
        # k2 is a width-1 projection: do it as a VPU mul + lane-reduce so the
        # 1-wide result never becomes its own HBM-bound pallas output.
        logits = jnp.sum(y * k2_w_ref[...], axis=-1, keepdims=True) + k2_b_ref[...]
        o_ref[...] = jax.nn.sigmoid(logits).reshape(1, S, 1)


# ---------------------------------------------------------------- wrapper ----

def transformer_forward(x, params, num_heads):
    B, S, F = x.shape
    L = params["in_w"].shape[0]

    # torch: x.view(seq_len, batch, feat) is a RAW reshape (no transpose).  Group
    # the rows belonging to each "transformer batch" b into a contiguous (S, F)
    # slab so the kernel can block on the batch axis.
    x_t = jnp.transpose(x.reshape(S, B, F), (1, 0, 2))           # (B, S, F)

    def layer_spec(arr):   # stacked per-layer parameter, indexed by layer grid id
        return pl.BlockSpec((1,) + arr.shape[1:], lambda b, l: (l, 0, 0))

    def const_spec(arr):   # head parameter, resident (constant block index)
        return pl.BlockSpec(arr.shape, lambda b, l: (0, 0))

    operands = (
        x_t,
        params["in_w"], params["in_b"], params["out_w"], params["out_b"],
        params["l1_w"], params["l1_b"], params["l2_w"], params["l2_b"],
        params["n1_g"], params["n1_b"], params["n2_g"], params["n2_b"],
        params["ln_g"], params["ln_b"], params["k1_w"], params["k1_b"],
        params["k2_w"], params["k2_b"],
    )
    in_specs = [pl.BlockSpec((1, S, F), lambda b, l: (b, 0, 0))]
    in_specs += [layer_spec(a) for a in operands[1:13]]
    in_specs += [const_spec(a) for a in operands[13:]]

    # NOTE: at these toy sizes everything (weights + activations, ~100 KB) fits
    # VMEM on v5e/v6e/v7x; for realistic S/F the (S, F) slab and weight blocks
    # would need tiled grids instead of full-array blocks.
    out = pl.pallas_call(
        functools.partial(_fused_transformer_kernel, num_heads=num_heads, eps=EPS),
        out_shape=jax.ShapeDtypeStruct((B, S, 1), jnp.float32),
        grid_spec=pltpu.PrefetchScalarGridSpec(
            num_scalar_prefetch=0,
            grid=(B, L),                                   # layer (sequential) axis last
            in_specs=in_specs,
            out_specs=pl.BlockSpec((1, S, 1), lambda b, l: (b, 0, 0)),
            scratch_shapes=[pltpu.VMEM((S, F), jnp.float32)],
        ),
        compiler_params=pltpu.CompilerParams(
            dimension_semantics=("parallel", "arbitrary")),
    )(*operands)

    # Undo the per-batch grouping: torch builds (S, B, 1) logits and returns
    # y.view(batch, -1), i.e. a raw reshape of the s-major / b-minor flat order.
    y_sb = out[:, :, 0].T                                        # (S, B)
    return y_sb.reshape(B, S)


# -------------------------------------------------------------- parameters ---

def init_params(key, F, num_layers):
    """Per-layer params stacked along a leading (num_layers, ...) axis.
    MXU weight matrices stored in bf16 (f32 accumulation in-kernel); biases and
    LayerNorm affine params stay f32."""
    def dense(k, fin, fout, scale=0.05, wdtype=jnp.bfloat16):
        kw, kb = jax.random.split(k)
        w = (jax.random.normal(kw, (fin, fout), jnp.float32) * scale).astype(wdtype)
        b = jax.random.normal(kb, (1, fout), jnp.float32) * scale
        return w, b

    keys = jax.random.split(key, num_layers + 2)
    in_w, in_b, out_w, out_b = [], [], [], []
    l1_w, l1_b, l2_w, l2_b = [], [], [], []
    for l in range(num_layers):
        ks = jax.random.split(keys[l], 4)
        w, b = dense(ks[0], F, 3 * F); in_w.append(w); in_b.append(b)   # MHA in_proj (q,k,v packed)
        w, b = dense(ks[1], F, F);     out_w.append(w); out_b.append(b)  # MHA out_proj
        w, b = dense(ks[2], F, F);     l1_w.append(w); l1_b.append(b)    # linear1 (dim_ff = F)
        w, b = dense(ks[3], F, F);     l2_w.append(w); l2_b.append(b)    # linear2

    k1_w, k1_b = dense(keys[num_layers], F, F)
    kw, kb = jax.random.split(keys[num_layers + 1])
    k2_w = jax.random.normal(kw, (1, F), jnp.float32) * 0.05             # torch weight layout (1, F)
    k2_b = jax.random.normal(kb, (1, 1), jnp.float32) * 0.05

    ones = jnp.ones((num_layers, 1, F), jnp.float32)
    zeros = jnp.zeros((num_layers, 1, F), jnp.float32)
    return dict(
        in_w=jnp.stack(in_w), in_b=jnp.stack(in_b),
        out_w=jnp.stack(out_w), out_b=jnp.stack(out_b),
        l1_w=jnp.stack(l1_w), l1_b=jnp.stack(l1_b),
        l2_w=jnp.stack(l2_w), l2_b=jnp.stack(l2_b),
        n1_g=ones, n1_b=zeros, n2_g=ones, n2_b=zeros,
        ln_g=jnp.ones((1, F), jnp.float32), ln_b=jnp.zeros((1, F), jnp.float32),
        k1_w=k1_w, k1_b=k1_b, k2_w=k2_w, k2_b=k2_b,
    )


# -------------------------------------------------------------------- main ---

if __name__ == "__main__":
    B, S, F, H, L = 2, 8, 64, 4, 2   # batch, seq, feature_dim, heads, encoder_layers
    key = jax.random.PRNGKey(0)
    kx, kp = jax.random.split(key)
    x = jax.random.normal(kx, (B, S, F), jnp.float32)
    params = init_params(kp, F, L)

    fwd = jax.jit(functools.partial(transformer_forward, num_heads=H))
    y = fwd(x, params)
    jax.block_until_ready(y)
    assert y.shape == (B, S) and y.dtype == jnp.float32
    assert bool(jnp.all(jnp.isfinite(y))) and bool(jnp.all((y > 0) & (y < 1)))
    print("KERNEL_OK")
</pallas_src>

<mosaic_0001>
module attributes {stable_mosaic.version = 11 : i64} {
  func.func @_fused_transformer_kernel(%arg0: i32, %arg1: i32, %arg2: memref<1x8x64xf32, #tpu.memory_space<vmem>>, %arg3: memref<1x64x192xbf16, #tpu.memory_space<vmem>>, %arg4: memref<1x1x192xf32, #tpu.memory_space<vmem>>, %arg5: memref<1x64x64xbf16, #tpu.memory_space<vmem>>, %arg6: memref<1x1x64xf32, #tpu.memory_space<vmem>>, %arg7: memref<1x64x64xbf16, #tpu.memory_space<vmem>>, %arg8: memref<1x1x64xf32, #tpu.memory_space<vmem>>, %arg9: memref<1x64x64xbf16, #tpu.memory_space<vmem>>, %arg10: memref<1x1x64xf32, #tpu.memory_space<vmem>>, %arg11: memref<1x1x64xf32, #tpu.memory_space<vmem>>, %arg12: memref<1x1x64xf32, #tpu.memory_space<vmem>>, %arg13: memref<1x1x64xf32, #tpu.memory_space<vmem>>, %arg14: memref<1x1x64xf32, #tpu.memory_space<vmem>>, %arg15: memref<1x64xf32, #tpu.memory_space<vmem>>, %arg16: memref<1x64xf32, #tpu.memory_space<vmem>>, %arg17: memref<64x64xbf16, #tpu.memory_space<vmem>>, %arg18: memref<1x64xf32, #tpu.memory_space<vmem>>, %arg19: memref<1x64xf32, #tpu.memory_space<vmem>>, %arg20: memref<1x1xf32, #tpu.memory_space<vmem>>, %arg21: memref<1x8x1xf32, #tpu.memory_space<vmem>>, %arg22: memref<8x64xf32, #tpu.memory_space<vmem>>) attributes {dimension_semantics = [#tpu.dimension_semantics<parallel>, #tpu.dimension_semantics<arbitrary>], iteration_bounds = array<i64: 2, 2>, scalar_prefetch = 0 : i64, scratch_operands = 1 : i64, tpu.core_type = #tpu.core_type<tc>, window_params = [{transform_indices = @transform_0, window_bounds = array<i64: 1, 8, 64>}, {transform_indices = @transform_1, window_bounds = array<i64: 1, 64, 192>}, {transform_indices = @transform_2, window_bounds = array<i64: 1, 1, 192>}, {transform_indices = @transform_3, window_bounds = array<i64: 1, 64, 64>}, {transform_indices = @transform_4, window_bounds = array<i64: 1, 1, 64>}, {transform_indices = @transform_5, window_bounds = array<i64: 1, 64, 64>}, {transform_indices = @transform_6, window_bounds = array<i64: 1, 1, 64>}, {transform_indices = @transform_7, window_bounds = array<i64: 1, 64, 64>}, {transform_indices = @transform_8, window_bounds = array<i64: 1, 1, 64>}, {transform_indices = @transform_9, window_bounds = array<i64: 1, 1, 64>}, {transform_indices = @transform_10, window_bounds = array<i64: 1, 1, 64>}, {transform_indices = @transform_11, window_bounds = array<i64: 1, 1, 64>}, {transform_indices = @transform_12, window_bounds = array<i64: 1, 1, 64>}, {pipeline_mode = #tpu.pipeline_mode<synchronous>, transform_indices = @transform_13, window_bounds = array<i64: 1, 64>}, {pipeline_mode = #tpu.pipeline_mode<synchronous>, transform_indices = @transform_14, window_bounds = array<i64: 1, 64>}, {pipeline_mode = #tpu.pipeline_mode<synchronous>, transform_indices = @transform_15, window_bounds = array<i64: 64, 64>}, {pipeline_mode = #tpu.pipeline_mode<synchronous>, transform_indices = @transform_16, window_bounds = array<i64: 1, 64>}, {pipeline_mode = #tpu.pipeline_mode<synchronous>, transform_indices = @transform_17, window_bounds = array<i64: 1, 64>}, {pipeline_mode = #tpu.pipeline_mode<synchronous>, transform_indices = @transform_18, window_bounds = array<i64: 1, 1>}, {transform_indices = @transform_19, window_bounds = array<i64: 1, 8, 1>}]} {
    %c0_i32 = arith.constant 0 : i32
    %0 = arith.cmpi eq, %arg1, %c0_i32 : i32
    %1 = arith.extui %0 : i1 to i32
    %c0_i32_0 = arith.constant 0 : i32
    %2 = arith.cmpi ne, %1, %c0_i32_0 : i32
    scf.if %2 {
      %c0_75 = arith.constant 0 : index
      %c0_76 = arith.constant 0 : index
      %c0_77 = arith.constant 0 : index
      %168 = vector.load %arg2[%c0_75, %c0_76, %c0_77] : memref<1x8x64xf32, #tpu.memory_space<vmem>>, vector<1x8x64xf32>
      %169 = vector.shape_cast %168 : vector<1x8x64xf32> to vector<8x64xf32>
      %c0_78 = arith.constant 0 : index
      %c0_79 = arith.constant 0 : index
      %170 = vector.load %arg22[%c0_78, %c0_79] : memref<8x64xf32, #tpu.memory_space<vmem>>, vector<8x64xf32>
      tpu.vector_store %arg22[%c0_78, %c0_79], %169 {strides = array<i32>} : memref<8x64xf32, #tpu.memory_space<vmem>>, vector<8x64xf32>,
    } else {
    }
    %c0 = arith.constant 0 : index
    %c0_1 = arith.constant 0 : index
    %3 = vector.load %arg22[%c0, %c0_1] : memref<8x64xf32, #tpu.memory_space<vmem>>, vector<8x64xf32>
    %4 = arith.truncf %3 : vector<8x64xf32> to vector<8x64xbf16>
    %c0_2 = arith.constant 0 : index
    %c0_3 = arith.constant 0 : index
    %c0_4 = arith.constant 0 : index
    %5 = vector.load %arg3[%c0_2, %c0_3, %c0_4] : memref<1x64x192xbf16, #tpu.memory_space<vmem>>, vector<1x64x192xbf16>
    %6 = vector.shape_cast %5 : vector<1x64x192xbf16> to vector<64x192xbf16>
    %cst = arith.constant dense<0.000000e+00> : vector<8x192xf32>
    %7 = tpu.matmul %4, %6, %cst {dimension_numbers = #tpu.dot_dimension_numbers<[1], [0], [0], [1], [0, 0, 1, 1], [], []>} : vector<8x64xbf16>, vector<64x192xbf16>, vector<8x192xf32> -> vector<8x192xf32>
    %c0_5 = arith.constant 0 : index
    %c0_6 = arith.constant 0 : index
    %c0_7 = arith.constant 0 : index
    %8 = vector.load %arg4[%c0_5, %c0_6, %c0_7] : memref<1x1x192xf32, #tpu.memory_space<vmem>>, vector<1x1x192xf32>
    %9 = vector.shape_cast %8 : vector<1x1x192xf32> to vector<1x192xf32>
    %10 = vector.broadcast %9 : vector<1x192xf32> to vector<8x192xf32>
    %11 = arith.addf %7, %10 : vector<8x192xf32>
    %12 = vector.extract_strided_slice %11 {offsets = [0, 0], sizes = [8, 64], strides = [1, 1]} : vector<8x192xf32> to vector<8x64xf32>
    %13 = vector.extract_strided_slice %11 {offsets = [0, 64], sizes = [8, 64], strides = [1, 1]} : vector<8x192xf32> to vector<8x64xf32>
    %14 = vector.extract_strided_slice %11 {offsets = [0, 128], sizes = [8, 64], strides = [1, 1]} : vector<8x192xf32> to vector<8x64xf32>
    %15 = vector.extract_strided_slice %12 {offsets = [0, 0], sizes = [8, 16], strides = [1, 1]} : vector<8x64xf32> to vector<8x16xf32>
    %16 = vector.extract_strided_slice %13 {offsets = [0, 0], sizes = [8, 16], strides = [1, 1]} : vector<8x64xf32> to vector<8x16xf32>
    %17 = vector.extract_strided_slice %14 {offsets = [0, 0], sizes = [8, 16], strides = [1, 1]} : vector<8x64xf32> to vector<8x16xf32>
    %cst_8 = arith.constant dense<0.000000e+00> : vector<8x8xf32>
    %18 = tpu.matmul %15, %16, %cst_8 {dimension_numbers = #tpu.dot_dimension_numbers<[1], [1], [0], [0], [0, 0, 1, 0], [], []>} : vector<8x16xf32>, vector<8x16xf32>, vector<8x8xf32> -> vector<8x8xf32>
    %cst_9 = arith.constant 2.500000e-01 : f32
    %19 = vector.broadcast %cst_9 : f32 to vector<8x8xf32>
    %20 = arith.mulf %18, %19 : vector<8x8xf32>
    %cst_10 = arith.constant dense<0xFF800000> : vector<8xf32>
    %21 = vector.multi_reduction <maximumf>, %20, %cst_10 [1] : vector<8x8xf32> to vector<8xf32>
    %22 = vector.shape_cast %21 : vector<8xf32> to vector<8x1xf32>
    %23 = vector.broadcast %22 : vector<8x1xf32> to vector<8x8xf32>
    %24 = arith.subf %20, %23 : vector<8x8xf32>
    %25 = math.exp %24 : vector<8x8xf32>
    %cst_11 = arith.constant dense<0.000000e+00> : vector<8xf32>
    %26 = vector.multi_reduction <add>, %25, %cst_11 [1] : vector<8x8xf32> to vector<8xf32>
    %27 = vector.shape_cast %26 : vector<8xf32> to vector<8x1xf32>
    %28 = tpu.reciprocal %27 {approx = true} : vector<8x1xf32> -> vector<8x1xf32>
    %29 = vector.broadcast %28 : vector<8x1xf32> to vector<8x8xf32>
    %30 = arith.mulf %25, %29 : vector<8x8xf32>
    %cst_12 = arith.constant dense<0.000000e+00> : vector<8x16xf32>
    %31 = tpu.matmul %30, %17, %cst_12 {dimension_numbers = #tpu.dot_dimension_numbers<[1], [0], [0], [1], [0, 0, 1, 1], [], []>} : vector<8x8xf32>, vector<8x16xf32>, vector<8x16xf32> -> vector<8x16xf32>
    %32 = vector.extract_strided_slice %12 {offsets = [0, 16], sizes = [8, 16], strides = [1, 1]} : vector<8x64xf32> to vector<8x16xf32>
    %33 = vector.extract_strided_slice %13 {offsets = [0, 16], sizes = [8, 16], strides = [1, 1]} : vector<8x64xf32> to vector<8x16xf32>
    %34 = vector.extract_strided_slice %14 {offsets = [0, 16], sizes = [8, 16], strides = [1, 1]} : vector<8x64xf32> to vector<8x16xf32>
    %cst_13 = arith.constant dense<0.000000e+00> : vector<8x8xf32>
    %35 = tpu.matmul %32, %33, %cst_13 {dimension_numbers = #tpu.dot_dimension_numbers<[1], [1], [0], [0], [0, 0, 1, 0], [], []>} : vector<8x16xf32>, vector<8x16xf32>, vector<8x8xf32> -> vector<8x8xf32>
    %cst_14 = arith.constant 2.500000e-01 : f32
    %36 = vector.broadcast %cst_14 : f32 to vector<8x8xf32>
    %37 = arith.mulf %35, %36 : vector<8x8xf32>
    %cst_15 = arith.constant dense<0xFF800000> : vector<8xf32>
    %38 = vector.multi_reduction <maximumf>, %37, %cst_15 [1] : vector<8x8xf32> to vector<8xf32>
    %39 = vector.shape_cast %38 : vector<8xf32> to vector<8x1xf32>
    %40 = vector.broadcast %39 : vector<8x1xf32> to vector<8x8xf32>
    %41 = arith.subf %37, %40 : vector<8x8xf32>
    %42 = math.exp %41 : vector<8x8xf32>
    %cst_16 = arith.constant dense<0.000000e+00> : vector<8xf32>
    %43 = vector.multi_reduction <add>, %42, %cst_16 [1] : vector<8x8xf32> to vector<8xf32>
    %44 = vector.shape_cast %43 : vector<8xf32> to vector<8x1xf32>
    %45 = tpu.reciprocal %44 {approx = true} : vector<8x1xf32> -> vector<8x1xf32>
    %46 = vector.broadcast %45 : vector<8x1xf32> to vector<8x8xf32>
    %47 = arith.mulf %42, %46 : vector<8x8xf32>
    %cst_17 = arith.constant dense<0.000000e+00> : vector<8x16xf32>
    %48 = tpu.matmul %47, %34, %cst_17 {dimension_numbers = #tpu.dot_dimension_numbers<[1], [0], [0], [1], [0, 0, 1, 1], [], []>} : vector<8x8xf32>, vector<8x16xf32>, vector<8x16xf32> -> vector<8x16xf32>
    %49 = vector.extract_strided_slice %12 {offsets = [0, 32], sizes = [8, 16], strides = [1, 1]} : vector<8x64xf32> to vector<8x16xf32>
    %50 = vector.extract_strided_slice %13 {offsets = [0, 32], sizes = [8, 16], strides = [1, 1]} : vector<8x64xf32> to vector<8x16xf32>
    %51 = vector.extract_strided_slice %14 {offsets = [0, 32], sizes = [8, 16], strides = [1, 1]} : vector<8x64xf32> to vector<8x16xf32>
    %cst_18 = arith.constant dense<0.000000e+00> : vector<8x8xf32>
    %52 = tpu.matmul %49, %50, %cst_18 {dimension_numbers = #tpu.dot_dimension_numbers<[1], [1], [0], [0], [0, 0, 1, 0], [], []>} : vector<8x16xf32>, vector<8x16xf32>, vector<8x8xf32> -> vector<8x8xf32>
    %cst_19 = arith.constant 2.500000e-01 : f32
    %53 = vector.broadcast %cst_19 : f32 to vector<8x8xf32>
    %54 = arith.mulf %52, %53 : vector<8x8xf32>
    %cst_20 = arith.constant dense<0xFF800000> : vector<8xf32>
    %55 = vector.multi_reduction <maximumf>, %54, %cst_20 [1] : vector<8x8xf32> to vector<8xf32>
    %56 = vector.shape_cast %55 : vector<8xf32> to vector<8x1xf32>
    %57 = vector.broadcast %56 : vector<8x1xf32> to vector<8x8xf32>
    %58 = arith.subf %54, %57 : vector<8x8xf32>
    %59 = math.exp %58 : vector<8x8xf32>
    %cst_21 = arith.constant dense<0.000000e+00> : vector<8xf32>
    %60 = vector.multi_reduction <add>, %59, %cst_21 [1] : vector<8x8xf32> to vector<8xf32>
    %61 = vector.shape_cast %60 : vector<8xf32> to vector<8x1xf32>
    %62 = tpu.reciprocal %61 {approx = true} : vector<8x1xf32> -> vector<8x1xf32>
    %63 = vector.broadcast %62 : vector<8x1xf32> to vector<8x8xf32>
    %64 = arith.mulf %59, %63 : vector<8x8xf32>
    %cst_22 = arith.constant dense<0.000000e+00> : vector<8x16xf32>
    %65 = tpu.matmul %64, %51, %cst_22 {dimension_numbers = #tpu.dot_dimension_numbers<[1], [0], [0], [1], [0, 0, 1, 1], [], []>} : vector<8x8xf32>, vector<8x16xf32>, vector<8x16xf32> -> vector<8x16xf32>
    %66 = vector.extract_strided_slice %12 {offsets = [0, 48], sizes = [8, 16], strides = [1, 1]} : vector<8x64xf32> to vector<8x16xf32>
    %67 = vector.extract_strided_slice %13 {offsets = [0, 48], sizes = [8, 16], strides = [1, 1]} : vector<8x64xf32> to vector<8x16xf32>
    %68 = vector.extract_strided_slice %14 {offsets = [0, 48], sizes = [8, 16], strides = [1, 1]} : vector<8x64xf32> to vector<8x16xf32>
    %cst_23 = arith.constant dense<0.000000e+00> : vector<8x8xf32>
    %69 = tpu.matmul %66, %67, %cst_23 {dimension_numbers = #tpu.dot_dimension_numbers<[1], [1], [0], [0], [0, 0, 1, 0], [], []>} : vector<8x16xf32>, vector<8x16xf32>, vector<8x8xf32> -> vector<8x8xf32>
    %cst_24 = arith.constant 2.500000e-01 : f32
    %70 = vector.broadcast %cst_24 : f32 to vector<8x8xf32>
    %71 = arith.mulf %69, %70 : vector<8x8xf32>
    %cst_25 = arith.constant dense<0xFF800000> : vector<8xf32>
    %72 = vector.multi_reduction <maximumf>, %71, %cst_25 [1] : vector<8x8xf32> to vector<8xf32>
    %73 = vector.shape_cast %72 : vector<8xf32> to vector<8x1xf32>
    %74 = vector.broadcast %73 : vector<8x1xf32> to vector<8x8xf32>
    %75 = arith.subf %71, %74 : vector<8x8xf32>
    %76 = math.exp %75 : vector<8x8xf32>
    %cst_26 = arith.constant dense<0.000000e+00> : vector<8xf32>
    %77 = vector.multi_reduction <add>, %76, %cst_26 [1] : vector<8x8xf32> to vector<8xf32>
    %78 = vector.shape_cast %77 : vector<8xf32> to vector<8x1xf32>
    %79 = tpu.reciprocal %78 {approx = true} : vector<8x1xf32> -> vector<8x1xf32>
    %80 = vector.broadcast %79 : vector<8x1xf32> to vector<8x8xf32>
    %81 = arith.mulf %76, %80 : vector<8x8xf32>
    %cst_27 = arith.constant dense<0.000000e+00> : vector<8x16xf32>
    %82 = tpu.matmul %81, %68, %cst_27 {dimension_numbers = #tpu.dot_dimension_numbers<[1], [0], [0], [1], [0, 0, 1, 1], [], []>} : vector<8x8xf32>, vector<8x16xf32>, vector<8x16xf32> -> vector<8x16xf32>
    %83 = tpu.concatenate %31, %48, %65, %82 in 1 : vector<8x16xf32>, vector<8x16xf32>, vector<8x16xf32>, vector<8x16xf32> -> vector<8x64xf32>
    %84 = arith.truncf %83 : vector<8x64xf32> to vector<8x64xbf16>
    %c0_28 = arith.constant 0 : index
    %c0_29 = arith.constant 0 : index
    %c0_30 = arith.constant 0 : index
    %85 = vector.load %arg5[%c0_28, %c0_29, %c0_30] : memref<1x64x64xbf16, #tpu.memory_space<vmem>>, vector<1x64x64xbf16>
    %86 = vector.shape_cast %85 : vector<1x64x64xbf16> to vector<64x64xbf16>
    %cst_31 = arith.constant dense<0.000000e+00> : vector<8x64xf32>
    %87 = tpu.matmul %84, %86, %cst_31 {dimension_numbers = #tpu.dot_dimension_numbers<[1], [0], [0], [1], [0, 0, 1, 1], [], []>} : vector<8x64xbf16>, vector<64x64xbf16>, vector<8x64xf32> -> vector<8x64xf32>
    %c0_32 = arith.constant 0 : index
    %c0_33 = arith.constant 0 : index
    %c0_34 = arith.constant 0 : index
    %88 = vector.load %arg6[%c0_32, %c0_33, %c0_34] : memref<1x1x64xf32, #tpu.memory_space<vmem>>, vector<1x1x64xf32>
    %89 = vector.shape_cast %88 : vector<1x1x64xf32> to vector<1x64xf32>
    %90 = vector.broadcast %89 : vector<1x64xf32> to vector<8x64xf32>
    %91 = arith.addf %87, %90 : vector<8x64xf32>
    %92 = arith.addf %3, %91 : vector<8x64xf32>
    %c0_35 = arith.constant 0 : index
    %c0_36 = arith.constant 0 : index
    %c0_37 = arith.constant 0 : index
    %93 = vector.load %arg11[%c0_35, %c0_36, %c0_37] : memref<1x1x64xf32, #tpu.memory_space<vmem>>, vector<1x1x64xf32>
    %94 = vector.shape_cast %93 : vector<1x1x64xf32> to vector<1x64xf32>
    %c0_38 = arith.constant 0 : index
    %c0_39 = arith.constant 0 : index
    %c0_40 = arith.constant 0 : index
    %95 = vector.load %arg12[%c0_38, %c0_39, %c0_40] : memref<1x1x64xf32, #tpu.memory_space<vmem>>, vector<1x1x64xf32>
    %96 = vector.shape_cast %95 : vector<1x1x64xf32> to vector<1x64xf32>
    %cst_41 = arith.constant dense<0.000000e+00> : vector<8xf32>
    %97 = vector.multi_reduction <add>, %92, %cst_41 [1] : vector<8x64xf32> to vector<8xf32>
    %98 = vector.shape_cast %97 : vector<8xf32> to vector<8x1xf32>
    %cst_42 = arith.constant 6.400000e+01 : f32
    %99 = vector.broadcast %cst_42 : f32 to vector<8x1xf32>
    %100 = arith.divf %98, %99 : vector<8x1xf32>
    %101 = vector.broadcast %100 : vector<8x1xf32> to vector<8x64xf32>
    %102 = arith.subf %92, %101 : vector<8x64xf32>
    %103 = arith.mulf %102, %102 : vector<8x64xf32>
    %cst_43 = arith.constant dense<0.000000e+00> : vector<8xf32>
    %104 = vector.multi_reduction <add>, %103, %cst_43 [1] : vector<8x64xf32> to vector<8xf32>
    %105 = vector.shape_cast %104 : vector<8xf32> to vector<8x1xf32>
    %cst_44 = arith.constant 6.400000e+01 : f32
    %106 = vector.broadcast %cst_44 : f32 to vector<8x1xf32>
    %107 = arith.divf %105, %106 : vector<8x1xf32>
    %108 = vector.broadcast %100 : vector<8x1xf32> to vector<8x64xf32>
    %109 = arith.subf %92, %108 : vector<8x64xf32>
    %cst_45 = arith.constant 9.99999974E-6 : f32
    %110 = vector.broadcast %cst_45 : f32 to vector<8x1xf32>
    %111 = arith.addf %107, %110 : vector<8x1xf32>
    %112 = math.rsqrt %111 : vector<8x1xf32>
    %113 = vector.broadcast %112 : vector<8x1xf32> to vector<8x64xf32>
    %114 = arith.mulf %109, %113 : vector<8x64xf32>
    %115 = vector.broadcast %94 : vector<1x64xf32> to vector<8x64xf32>
    %116 = arith.mulf %114, %115 : vector<8x64xf32>
    %117 = vector.broadcast %96 : vector<1x64xf32> to vector<8x64xf32>
    %118 = arith.addf %116, %117 : vector<8x64xf32>
    %119 = arith.truncf %118 : vector<8x64xf32> to vector<8x64xbf16>
    %c0_46 = arith.constant 0 : index
    %c0_47 = arith.constant 0 : index
    %c0_48 = arith.constant 0 : index
    %120 = vector.load %arg7[%c0_46, %c0_47, %c0_48] : memref<1x64x64xbf16, #tpu.memory_space<vmem>>, vector<1x64x64xbf16>
    %121 = vector.shape_cast %120 : vector<1x64x64xbf16> to vector<64x64xbf16>
    %cst_49 = arith.constant dense<0.000000e+00> : vector<8x64xf32>
    %122 = tpu.matmul %119, %121, %cst_49 {dimension_numbers = #tpu.dot_dimension_numbers<[1], [0], [0], [1], [0, 0, 1, 1], [], []>} : vector<8x64xbf16>, vector<64x64xbf16>, vector<8x64xf32> -> vector<8x64xf32>
    %c0_50 = arith.constant 0 : index
    %c0_51 = arith.constant 0 : index
    %c0_52 = arith.constant 0 : index
    %123 = vector.load %arg8[%c0_50, %c0_51, %c0_52] : memref<1x1x64xf32, #tpu.memory_space<vmem>>, vector<1x1x64xf32>
    %124 = vector.shape_cast %123 : vector<1x1x64xf32> to vector<1x64xf32>
    %125 = vector.broadcast %124 : vector<1x64xf32> to vector<8x64xf32>
    %126 = arith.addf %122, %125 : vector<8x64xf32>
    %cst_53 = arith.constant 0.000000e+00 : f32
    %127 = vector.broadcast %cst_53 : f32 to vector<8x64xf32>
    %128 = arith.maximumf %126, %127 : vector<8x64xf32>
    %129 = arith.truncf %128 : vector<8x64xf32> to vector<8x64xbf16>
    %c0_54 = arith.constant 0 : index
    %c0_55 = arith.constant 0 : index
    %c0_56 = arith.constant 0 : index
    %130 = vector.load %arg9[%c0_54, %c0_55, %c0_56] : memref<1x64x64xbf16, #tpu.memory_space<vmem>>, vector<1x64x64xbf16>
    %131 = vector.shape_cast %130 : vector<1x64x64xbf16> to vector<64x64xbf16>
    %cst_57 = arith.constant dense<0.000000e+00> : vector<8x64xf32>
    %132 = tpu.matmul %129, %131, %cst_57 {dimension_numbers = #tpu.dot_dimension_numbers<[1], [0], [0], [1], [0, 0, 1, 1], [], []>} : vector<8x64xbf16>, vector<64x64xbf16>, vector<8x64xf32> -> vector<8x64xf32>
    %c0_58 = arith.constant 0 : index
    %c0_59 = arith.constant 0 : index
    %c0_60 = arith.constant 0 : index
    %133 = vector.load %arg10[%c0_58, %c0_59, %c0_60] : memref<1x1x64xf32, #tpu.memory_space<vmem>>, vector<1x1x64xf32>
    %134 = vector.shape_cast %133 : vector<1x1x64xf32> to vector<1x64xf32>
    %135 = vector.broadcast %134 : vector<1x64xf32> to vector<8x64xf32>
    %136 = arith.addf %132, %135 : vector<8x64xf32>
    %137 = arith.addf %118, %136 : vector<8x64xf32>
    %c0_61 = arith.constant 0 : index
    %c0_62 = arith.constant 0 : index
    %c0_63 = arith.constant 0 : index
    %138 = vector.load %arg13[%c0_61, %c0_62, %c0_63] : memref<1x1x64xf32, #tpu.memory_space<vmem>>, vector<1x1x64xf32>
    %139 = vector.shape_cast %138 : vector<1x1x64xf32> to vector<1x64xf32>
    %c0_64 = arith.constant 0 : index
    %c0_65 = arith.constant 0 : index
    %c0_66 = arith.constant 0 : index
    %140 = vector.load %arg14[%c0_64, %c0_65, %c0_66] : memref<1x1x64xf32, #tpu.memory_space<vmem>>, vector<1x1x64xf32>
    %141 = vector.shape_cast %140 : vector<1x1x64xf32> to vector<1x64xf32>
    %cst_67 = arith.constant dense<0.000000e+00> : vector<8xf32>
    %142 = vector.multi_reduction <add>, %137, %cst_67 [1] : vector<8x64xf32> to vector<8xf32>
    %143 = vector.shape_cast %142 : vector<8xf32> to vector<8x1xf32>
    %cst_68 = arith.constant 6.400000e+01 : f32
    %144 = vector.broadcast %cst_68 : f32 to vector<8x1xf32>
    %145 = arith.divf %143, %144 : vector<8x1xf32>
    %146 = vector.broadcast %145 : vector<8x1xf32> to vector<8x64xf32>
    %147 = arith.subf %137, %146 : vector<8x64xf32>
    %148 = arith.mulf %147, %147 : vector<8x64xf32>
    %cst_69 = arith.constant dense<0.000000e+00> : vector<8xf32>
    %149 = vector.multi_reduction <add>, %148, %cst_69 [1] : vector<8x64xf32> to vector<8xf32>
    %150 = vector.shape_cast %149 : vector<8xf32> to vector<8x1xf32>
    %cst_70 = arith.constant 6.400000e+01 : f32
    %151 = vector.broadcast %cst_70 : f32 to vector<8x1xf32>
    %152 = arith.divf %150, %151 : vector<8x1xf32>
    %153 = vector.broadcast %145 : vector<8x1xf32> to vector<8x64xf32>
    %154 = arith.subf %137, %153 : vector<8x64xf32>
    %cst_71 = arith.constant 9.99999974E-6 : f32
    %155 = vector.broadcast %cst_71 : f32 to vector<8x1xf32>
    %156 = arith.addf %152, %155 : vector<8x1xf32>
    %157 = math.rsqrt %156 : vector<8x1xf32>
    %158 = vector.broadcast %157 : vector<8x1xf32> to vector<8x64xf32>
    %159 = arith.mulf %154, %158 : vector<8x64xf32>
    %160 = vector.broadcast %139 : vector<1x64xf32> to vector<8x64xf32>
    %161 = arith.mulf %159, %160 : vector<8x64xf32>
    %162 = vector.broadcast %141 : vector<1x64xf32> to vector<8x64xf32>
    %163 = arith.addf %161, %162 : vector<8x64xf32>
    %c0_72 = arith.constant 0 : index
    %c0_73 = arith.constant 0 : index
    %164 = vector.load %arg22[%c0_72, %c0_73] : memref<8x64xf32, #tpu.memory_space<vmem>>, vector<8x64xf32>
    tpu.vector_store %arg22[%c0_72, %c0_73], %163 {strides = array<i32>} : memref<8x64xf32, #tpu.memory_space<vmem>>, vector<8x64xf32>,
    %c1_i32 = arith.constant 1 : i32
    %165 = arith.cmpi eq, %arg1, %c1_i32 : i32
    %166 = arith.extui %165 : i1 to i32
    %c0_i32_74 = arith.constant 0 : i32
    %167 = arith.cmpi ne, %166, %c0_i32_74 : i32
    scf.if %167 {
      %c0_75 = arith.constant 0 : index
      %c0_76 = arith.constant 0 : index
      %168 = vector.load %arg15[%c0_75, %c0_76] : memref<1x64xf32, #tpu.memory_space<vmem>>, vector<1x64xf32>
      %c0_77 = arith.constant 0 : index
      %c0_78 = arith.constant 0 : index
      %169 = vector.load %arg16[%c0_77, %c0_78] : memref<1x64xf32, #tpu.memory_space<vmem>>, vector<1x64xf32>
      %cst_79 = arith.constant dense<0.000000e+00> : vector<8xf32>
      %170 = vector.multi_reduction <add>, %163, %cst_79 [1] : vector<8x64xf32> to vector<8xf32>
      %171 = vector.shape_cast %170 : vector<8xf32> to vector<8x1xf32>
      %cst_80 = arith.constant 6.400000e+01 : f32
      %172 = vector.broadcast %cst_80 : f32 to vector<8x1xf32>
      %173 = arith.divf %171, %172 : vector<8x1xf32>
      %174 = vector.broadcast %173 : vector<8x1xf32> to vector<8x64xf32>
      %175 = arith.subf %163, %174 : vector<8x64xf32>
      %176 = arith.mulf %175, %175 : vector<8x64xf32>
      %cst_81 = arith.constant dense<0.000000e+00> : vector<8xf32>
      %177 = vector.multi_reduction <add>, %176, %cst_81 [1] : vector<8x64xf32> to vector<8xf32>
      %178 = vector.shape_cast %177 : vector<8xf32> to vector<8x1xf32>
      %cst_82 = arith.constant 6.400000e+01 : f32
      %179 = vector.broadcast %cst_82 : f32 to vector<8x1xf32>
      %180 = arith.divf %178, %179 : vector<8x1xf32>
      %181 = vector.broadcast %173 : vector<8x1xf32> to vector<8x64xf32>
      %182 = arith.subf %163, %181 : vector<8x64xf32>
      %cst_83 = arith.constant 9.99999974E-6 : f32
      %183 = vector.broadcast %cst_83 : f32 to vector<8x1xf32>
      %184 = arith.addf %180, %183 : vector<8x1xf32>
      %185 = math.rsqrt %184 : vector<8x1xf32>
      %186 = vector.broadcast %185 : vector<8x1xf32> to vector<8x64xf32>
      %187 = arith.mulf %182, %186 : vector<8x64xf32>
      %188 = vector.broadcast %168 : vector<1x64xf32> to vector<8x64xf32>
      %189 = arith.mulf %187, %188 : vector<8x64xf32>
      %190 = vector.broadcast %169 : vector<1x64xf32> to vector<8x64xf32>
      %191 = arith.addf %189, %190 : vector<8x64xf32>
      %192 = arith.truncf %191 : vector<8x64xf32> to vector<8x64xbf16>
      %c0_84 = arith.constant 0 : index
      %c0_85 = arith.constant 0 : index
      %193 = vector.load %arg17[%c0_84, %c0_85] : memref<64x64xbf16, #tpu.memory_space<vmem>>, vector<64x64xbf16>
      %cst_86 = arith.constant dense<0.000000e+00> : vector<8x64xf32>
      %194 = tpu.matmul %192, %193, %cst_86 {dimension_numbers = #tpu.dot_dimension_numbers<[1], [0], [0], [1], [0, 0, 1, 1], [], []>} : vector<8x64xbf16>, vector<64x64xbf16>, vector<8x64xf32> -> vector<8x64xf32>
      %c0_87 = arith.constant 0 : index
      %c0_88 = arith.constant 0 : index
      %195 = vector.load %arg18[%c0_87, %c0_88] : memref<1x64xf32, #tpu.memory_space<vmem>>, vector<1x64xf32>
      %196 = vector.broadcast %195 : vector<1x64xf32> to vector<8x64xf32>
      %197 = arith.addf %194, %196 : vector<8x64xf32>
      %cst_89 = arith.constant 0.000000e+00 : f32
      %198 = vector.broadcast %cst_89 : f32 to vector<8x64xf32>
      %199 = arith.maximumf %197, %198 : vector<8x64xf32>
      %c0_90 = arith.constant 0 : index
      %c0_91 = arith.constant 0 : index
      %200 = vector.load %arg15[%c0_90, %c0_91] : memref<1x64xf32, #tpu.memory_space<vmem>>, vector<1x64xf32>
      %c0_92 = arith.constant 0 : index
      %c0_93 = arith.constant 0 : index
      %201 = vector.load %arg16[%c0_92, %c0_93] : memref<1x64xf32, #tpu.memory_space<vmem>>, vector<1x64xf32>
      %cst_94 = arith.constant dense<0.000000e+00> : vector<8xf32>
      %202 = vector.multi_reduction <add>, %199, %cst_94 [1] : vector<8x64xf32> to vector<8xf32>
      %203 = vector.shape_cast %202 : vector<8xf32> to vector<8x1xf32>
      %cst_95 = arith.constant 6.400000e+01 : f32
      %204 = vector.broadcast %cst_95 : f32 to vector<8x1xf32>
      %205 = arith.divf %203, %204 : vector<8x1xf32>
      %206 = vector.broadcast %205 : vector<8x1xf32> to vector<8x64xf32>
      %207 = arith.subf %199, %206 : vector<8x64xf32>
      %208 = arith.mulf %207, %207 : vector<8x64xf32>
      %cst_96 = arith.constant dense<0.000000e+00> : vector<8xf32>
      %209 = vector.multi_reduction <add>, %208, %cst_96 [1] : vector<8x64xf32> to vector<8xf32>
      %210 = vector.shape_cast %209 : vector<8xf32> to vector<8x1xf32>
      %cst_97 = arith.constant 6.400000e+01 : f32
      %211 = vector.broadcast %cst_97 : f32 to vector<8x1xf32>
      %212 = arith.divf %210, %211 : vector<8x1xf32>
      %213 = vector.broadcast %205 : vector<8x1xf32> to vector<8x64xf32>
      %214 = arith.subf %199, %213 : vector<8x64xf32>
      %cst_98 = arith.constant 9.99999974E-6 : f32
      %215 = vector.broadcast %cst_98 : f32 to vector<8x1xf32>
      %216 = arith.addf %212, %215 : vector<8x1xf32>
      %217 = math.rsqrt %216 : vector<8x1xf32>
      %218 = vector.broadcast %217 : vector<8x1xf32> to vector<8x64xf32>
      %219 = arith.mulf %214, %218 : vector<8x64xf32>
      %220 = vector.broadcast %200 : vector<1x64xf32> to vector<8x64xf32>
      %221 = arith.mulf %219, %220 : vector<8x64xf32>
      %222 = vector.broadcast %201 : vector<1x64xf32> to vector<8x64xf32>
      %223 = arith.addf %221, %222 : vector<8x64xf32>
      %c0_99 = arith.constant 0 : index
      %c0_100 = arith.constant 0 : index
      %224 = vector.load %arg19[%c0_99, %c0_100] : memref<1x64xf32, #tpu.memory_space<vmem>>, vector<1x64xf32>
      %225 = vector.broadcast %224 : vector<1x64xf32> to vector<8x64xf32>
      %226 = arith.mulf %223, %225 : vector<8x64xf32>
      %cst_101 = arith.constant dense<0.000000e+00> : vector<8xf32>
      %227 = vector.multi_reduction <add>, %226, %cst_101 [1] : vector<8x64xf32> to vector<8xf32>
      %228 = vector.shape_cast %227 : vector<8xf32> to vector<8x1xf32>
      %c0_102 = arith.constant 0 : index
      %c0_103 = arith.constant 0 : index
      %229 = vector.load %arg20[%c0_102, %c0_103] : memref<1x1xf32, #tpu.memory_space<vmem>>, vector<1x1xf32>
      %230 = vector.broadcast %229 : vector<1x1xf32> to vector<8x1xf32>
      %231 = arith.addf %228, %230 : vector<8x1xf32>
      %232 = arith.negf %231 : vector<8x1xf32>
      %233 = math.exp %232 : vector<8x1xf32>
      %cst_104 = arith.constant 1.000000e+00 : f32
      %234 = vector.broadcast %cst_104 : f32 to vector<8x1xf32>
      %235 = arith.addf %234, %233 : vector<8x1xf32>
      %236 = arith.divf %234, %235 : vector<8x1xf32>
      %237 = vector.shape_cast %236 : vector<8x1xf32> to vector<1x8x1xf32>
      %c0_105 = arith.constant 0 : index
      %c0_106 = arith.constant 0 : index
      %c0_107 = arith.constant 0 : index
      %238 = vector.load %arg21[%c0_105, %c0_106, %c0_107] : memref<1x8x1xf32, #tpu.memory_space<vmem>>, vector<1x8x1xf32>
      tpu.vector_store %arg21[%c0_105, %c0_106, %c0_107], %237 {strides = array<i32>} : memref<1x8x1xf32, #tpu.memory_space<vmem>>, vector<1x8x1xf32>,
    } else {
    }
    return
  }
  func.func @transform_0(%arg0: i32, %arg1: i32) -> (i32, i32, i32) {
    %c0_i32 = arith.constant 0 : i32
    %c0_i32_0 = arith.constant 0 : i32
    %c0_i32_1 = arith.constant 0 : i32
    return %arg0, %c0_i32, %c0_i32_0 : i32, i32, i32
  }
  func.func @transform_1(%arg0: i32, %arg1: i32) -> (i32, i32, i32) {
    %c0_i32 = arith.constant 0 : i32
    %c0_i32_0 = arith.constant 0 : i32
    %c0_i32_1 = arith.constant 0 : i32
    return %arg1, %c0_i32, %c0_i32_0 : i32, i32, i32
  }
  func.func @transform_2(%arg0: i32, %arg1: i32) -> (i32, i32, i32) {
    %c0_i32 = arith.constant 0 : i32
    %c0_i32_0 = arith.constant 0 : i32
    %c0_i32_1 = arith.constant 0 : i32
    return %arg1, %c0_i32, %c0_i32_0 : i32, i32, i32
  }
  func.func @transform_3(%arg0: i32, %arg1: i32) -> (i32, i32, i32) {
    %c0_i32 = arith.constant 0 : i32
    %c0_i32_0 = arith.constant 0 : i32
    %c0_i32_1 = arith.constant 0 : i32
    return %arg1, %c0_i32, %c0_i32_0 : i32, i32, i32
  }
  func.func @transform_4(%arg0: i32, %arg1: i32) -> (i32, i32, i32) {
    %c0_i32 = arith.constant 0 : i32
    %c0_i32_0 = arith.constant 0 : i32
    %c0_i32_1 = arith.constant 0 : i32
    return %arg1, %c0_i32, %c0_i32_0 : i32, i32, i32
  }
  func.func @transform_5(%arg0: i32, %arg1: i32) -> (i32, i32, i32) {
    %c0_i32 = arith.constant 0 : i32
    %c0_i32_0 = arith.constant 0 : i32
    %c0_i32_1 = arith.constant 0 : i32
    return %arg1, %c0_i32, %c0_i32_0 : i32, i32, i32
  }
  func.func @transform_6(%arg0: i32, %arg1: i32) -> (i32, i32, i32) {
    %c0_i32 = arith.constant 0 : i32
    %c0_i32_0 = arith.constant 0 : i32
    %c0_i32_1 = arith.constant 0 : i32
    return %arg1, %c0_i32, %c0_i32_0 : i32, i32, i32
  }
  func.func @transform_7(%arg0: i32, %arg1: i32) -> (i32, i32, i32) {
    %c0_i32 = arith.constant 0 : i32
    %c0_i32_0 = arith.constant 0 : i32
    %c0_i32_1 = arith.constant 0 : i32
    return %arg1, %c0_i32, %c0_i32_0 : i32, i32, i32
  }
  func.func @transform_8(%arg0: i32, %arg1: i32) -> (i32, i32, i32) {
    %c0_i32 = arith.constant 0 : i32
    %c0_i32_0 = arith.constant 0 : i32
    %c0_i32_1 = arith.constant 0 : i32
    return %arg1, %c0_i32, %c0_i32_0 : i32, i32, i32
  }
  func.func @transform_9(%arg0: i32, %arg1: i32) -> (i32, i32, i32) {
    %c0_i32 = arith.constant 0 : i32
    %c0_i32_0 = arith.constant 0 : i32
    %c0_i32_1 = arith.constant 0 : i32
    return %arg1, %c0_i32, %c0_i32_0 : i32, i32, i32
  }
  func.func @transform_10(%arg0: i32, %arg1: i32) -> (i32, i32, i32) {
    %c0_i32 = arith.constant 0 : i32
    %c0_i32_0 = arith.constant 0 : i32
    %c0_i32_1 = arith.constant 0 : i32
    return %arg1, %c0_i32, %c0_i32_0 : i32, i32, i32
  }
  func.func @transform_11(%arg0: i32, %arg1: i32) -> (i32, i32, i32) {
    %c0_i32 = arith.constant 0 : i32
    %c0_i32_0 = arith.constant 0 : i32
    %c0_i32_1 = arith.constant 0 : i32
    return %arg1, %c0_i32, %c0_i32_0 : i32, i32, i32
  }
  func.func @transform_12(%arg0: i32, %arg1: i32) -> (i32, i32, i32) {
    %c0_i32 = arith.constant 0 : i32
    %c0_i32_0 = arith.constant 0 : i32
    %c0_i32_1 = arith.constant 0 : i32
    return %arg1, %c0_i32, %c0_i32_0 : i32, i32, i32
  }
  func.func @transform_13(%arg0: i32, %arg1: i32) -> (i32, i32) {
    %c0_i32 = arith.constant 0 : i32
    %c0_i32_0 = arith.constant 0 : i32
    %c0_i32_1 = arith.constant 0 : i32
    return %c0_i32, %c0_i32_0 : i32, i32
  }
  func.func @transform_14(%arg0: i32, %arg1: i32) -> (i32, i32) {
    %c0_i32 = arith.constant 0 : i32
    %c0_i32_0 = arith.constant 0 : i32
    %c0_i32_1 = arith.constant 0 : i32
    return %c0_i32, %c0_i32_0 : i32, i32
  }
  func.func @transform_15(%arg0: i32, %arg1: i32) -> (i32, i32) {
    %c0_i32 = arith.constant 0 : i32
    %c0_i32_0 = arith.constant 0 : i32
    %c0_i32_1 = arith.constant 0 : i32
    return %c0_i32, %c0_i32_0 : i32, i32
  }
  func.func @transform_16(%arg0: i32, %arg1: i32) -> (i32, i32) {
    %c0_i32 = arith.constant 0 : i32
    %c0_i32_0 = arith.constant 0 : i32
    %c0_i32_1 = arith.constant 0 : i32
    return %c0_i32, %c0_i32_0 : i32, i32
  }
  func.func @transform_17(%arg0: i32, %arg1: i32) -> (i32, i32) {
    %c0_i32 = arith.constant 0 : i32
    %c0_i32_0 = arith.constant 0 : i32
    %c0_i32_1 = arith.constant 0 : i32
    return %c0_i32, %c0_i32_0 : i32, i32
  }
  func.func @transform_18(%arg0: i32, %arg1: i32) -> (i32, i32) {
    %c0_i32 = arith.constant 0 : i32
    %c0_i32_0 = arith.constant 0 : i32
    %c0_i32_1 = arith.constant 0 : i32
    return %c0_i32, %c0_i32_0 : i32, i32
  }
  func.func @transform_19(%arg0: i32, %arg1: i32) -> (i32, i32, i32) {
    %c0_i32 = arith.constant 0 : i32
    %c0_i32_0 = arith.constant 0 : i32
    %c0_i32_1 = arith.constant 0 : i32
    return %arg0, %c0_i32, %c0_i32_0 : i32, i32, i32
  }
}

</mosaic_0001>

<llo_original>
// kernel: transformer_forward.1
$region0: #{transformer_forward.1}
  #allocation0 [shape = 'u32[]', space=smem, size = 0x4, offset = 0x4, fixed_abs, tag = 'smem constant byte address 0x4 - core index']
  #allocation1 [shape = 'u32[144,128]{1,0:T(1,128)}', space=vmem, size = 0x12000, scoped, tag = 'internal scratch']
  #allocation2 [shape = 'f32[8,64]{1,0:T(8,128)}', space=vmem, size = 0x1000, scoped, tag = 'scratch operand']
  #allocation3 [shape = 'f32[1,1]{1,0:T(1,128)S(1)}', space=vmem, size = 0x200, scoped, tag = 'scoped memory for transformer_forward.1']
  %s0 = inlined_call_operand.vmem [shape: f32[2,8,64], index: 0, kind: input, shape index: {}]
  %s1 = inlined_call_operand.hbm [shape: bf16[2,64,192], index: 1, kind: input, shape index: {}]
  %s2 = inlined_call_operand.vmem [shape: f32[2,1,192], index: 2, kind: input, shape index: {}]
  %s3 = inlined_call_operand.vmem [shape: bf16[2,64,64], index: 3, kind: input, shape index: {}]
  %s4 = inlined_call_operand.vmem [shape: f32[2,1,64], index: 4, kind: input, shape index: {}]
  %s5 = inlined_call_operand.hbm [shape: bf16[2,64,64], index: 5, kind: input, shape index: {}]
  %s6 = inlined_call_operand.hbm [shape: f32[2,1,64], index: 6, kind: input, shape index: {}]
  %s7 = inlined_call_operand.hbm [shape: bf16[2,64,64], index: 7, kind: input, shape index: {}]
  %s8 = inlined_call_operand.hbm [shape: f32[2,1,64], index: 8, kind: input, shape index: {}]
  %s9 = inlined_call_operand.hbm [shape: f32[2,1,64], index: 9, kind: input, shape index: {}]
  %s10 = inlined_call_operand.hbm [shape: f32[2,1,64], index: 10, kind: input, shape index: {}]
  %s11 = inlined_call_operand.hbm [shape: f32[2,1,64], index: 11, kind: input, shape index: {}]
  %s12 = inlined_call_operand.hbm [shape: f32[2,1,64], index: 12, kind: input, shape index: {}]
  %s13 = inlined_call_operand.vmem [shape: f32[1,64], index: 13, kind: input, shape index: {}]
  %s14 = inlined_call_operand.hbm [shape: f32[1,64], index: 14, kind: input, shape index: {}]
  %s15 = inlined_call_operand.vmem [shape: bf16[64,64], index: 15, kind: input, shape index: {}]
  %s16 = inlined_call_operand.hbm [shape: f32[1,64], index: 16, kind: input, shape index: {}]
  %s17 = inlined_call_operand.hbm [shape: f32[1,64], index: 17, kind: input, shape index: {}]
  %s18 = inlined_call_operand.<no memory space> [shape: f32[1,1], index: 18, kind: input, shape index: {}]
  %s19 = inlined_call_operand.vmem [shape: f32[2,8,1], index: 19, kind: output, shape index: {}]
  %s20 = sld [smem:[#allocation0]]
  $region165: #{transformer_forward.1} parent=0
    _
  %s22 = ssub.s32 1, %s20
  %s23 = scalar_select 0, %s22, %s20
  %v24 = vstv %s18
  %25 = vst [vmem:[#allocation3] sm:$0x1] %v24
  $region1: #{transformer_forward.1} parent=0
    #allocation4 [shape = 'u8[65536]{0}', space=vmem, size = 0x10000, scoped, tag = 'input window, operand 1']
    #allocation5 [shape = 's32[2]{0}', space=sflag, size = 0x8, scoped, tag = 'scoped memory for transformer_forward.1']
    #allocation6 [shape = 'u8[32768]{0}', space=vmem, size = 0x8000, scoped, tag = 'input window, operand 5']
    #allocation7 [shape = 's32[2]{0}', space=sflag, size = 0x8, scoped, tag = 'scoped memory for transformer_forward.1']
    #allocation8 [shape = 'u8[1024]{0}', space=vmem, size = 0x400, scoped, tag = 'input window, operand 6']
    #allocation9 [shape = 'u8[32768]{0}', space=vmem, size = 0x8000, scoped, tag = 'input window, operand 7']
    #allocation10 [shape = 's32[2]{0}', space=sflag, size = 0x8, scoped, tag = 'scoped memory for transformer_forward.1']
    #allocation11 [shape = 'u8[1024]{0}', space=vmem, size = 0x400, scoped, tag = 'input window, operand 8']
    #allocation12 [shape = 'u8[1024]{0}', space=vmem, size = 0x400, scoped, tag = 'input window, operand 9']
    #allocation13 [shape = 's32[2]{0}', space=sflag, size = 0x8, scoped, tag = 'scoped memory for transformer_forward.1']
    #allocation14 [shape = 'u8[1024]{0}', space=vmem, size = 0x400, scoped, tag = 'input window, operand 10']
    #allocation15 [shape = 'u8[1024]{0}', space=vmem, size = 0x400, scoped, tag = 'input window, operand 11']
    #allocation16 [shape = 's32[2]{0}', space=sflag, size = 0x8, scoped, tag = 'scoped memory for transformer_forward.1']
    #allocation17 [shape = 'u8[1024]{0}', space=vmem, size = 0x400, scoped, tag = 'input window, operand 12']
    #allocation18 [shape = 'u8[512]{0}', space=vmem, size = 0x400, scoped, tag = 'input window, operand 14, single buffered']
    #allocation19 [shape = 's32[1]{0}', space=sflag, size = 0x4, scoped, tag = 'scoped memory for transformer_forward.1']
    #allocation20 [shape = 'u8[512]{0}', space=vmem, size = 0x400, scoped, tag = 'input window, operand 16, single buffered']
    #allocation21 [shape = 'u8[512]{0}', space=vmem, size = 0x400, scoped, tag = 'input window, operand 17, single buffered']
    #allocation22 [shape = 's32[1]{0}', space=sflag, size = 0x4, scoped, tag = 'scoped memory for transformer_forward.1']
    %26 = vsyncpa [#allocation5], 0
    %s27 = scalar_lea.sflag [#allocation5], 1
    %28 = vsyncpa %s27, 0
    %29 = vsyncpa [#allocation7], 0
    %s30 = scalar_lea.sflag [#allocation7], 1
    %31 = vsyncpa %s30, 0
    %32 = vsyncpa [#allocation10], 0
    %s33 = scalar_lea.sflag [#allocation10], 1
    %34 = vsyncpa %s33, 0
    %35 = vsyncpa [#allocation13], 0
    %s36 = scalar_lea.sflag [#allocation13], 1
    %37 = vsyncpa %s36, 0
    %38 = vsyncpa [#allocation16], 0
    %s39 = scalar_lea.sflag [#allocation16], 1
    %40 = vsyncpa %s39, 0
    %41 = vsyncpa [#allocation19], 0
    %42 = vsyncpa [#allocation22], 0
    loop: start=0, step=1, limit=6
    $region2: #{transformer_forward.1} parent=1 // loop_pre_header
      _
    $region3: #{transformer_forward.1} parent=1 // loop_header
      %s44 = sphi 0, %s48
      %p45 = scmp.ge.s32.totalorder %s44, 6
      %s51 = sphi 0, %s63
      %s52 = sphi 0, %s59
      %s53 = sphi 0, %s51
      %s54 = sphi 0, %s52
      %s55 = sphi 0, %s53
      %s56 = sphi 0, %s54
      %s66 = sphi 0, %s68
      %s69 = sphi 0, %s66
      %s70 = sphi 0, %s69
      %s86 = sphi 0, %s70
      %s92 = sphi 0, %s94
      %s95 = sphi 0, %s92
      %s96 = sphi 0, %s95
      %s112 = sphi 0, %s96
      %s118 = sphi 0, %s120
      %s121 = sphi 0, %s118
      %s122 = sphi 0, %s121
      %s138 = sphi 0, %s122
      %s144 = sphi 0, %s146
      %s147 = sphi 0, %s144
      %s148 = sphi 0, %s147
      %s164 = sphi 0, %s148
      %s170 = sphi 0, %s172
      %s173 = sphi 0, %s170
      %s174 = sphi 0, %s173
      %s190 = sphi 0, %s174
      %s196 = sphi 0, %s198
      %s199 = sphi 0, %s196
      %s200 = sphi 0, %s199
      %s216 = sphi 0, %s200
      %s222 = sphi 0, %s224
      %s225 = sphi 0, %s222
      %s226 = sphi 0, %s225
      %s242 = sphi 0, %s226
      %s248 = sphi 0, %s250
      %s251 = sphi 0, %s248
      %s252 = sphi 0, %s251
      %s268 = sphi 0, %s252
      %s274 = sphi 0, %s276
      %s277 = sphi 0, %s274
      %s278 = sphi 0, %s277
      %s294 = sphi 0, %s278
      %s300 = sphi 0, %s302
      %s303 = sphi 0, %s300
      %s304 = sphi 0, %s303
      %s320 = sphi 0, %s304
      %s326 = sphi 0, %s328
      %s329 = sphi 0, %s326
      %s330 = sphi 0, %s329
      %s346 = sphi 0, %s330
      %s352 = sphi 0, %s354
      %s355 = sphi 0, %s352
      %s356 = sphi 0, %s355
      %s372 = sphi 0, %s356
      %s378 = sphi 0, %s380
      %s381 = sphi 0, %s378
      %s382 = sphi 0, %s381
      %s398 = sphi 0, %s382
      %s402 = sphi 0, %s402
      %s404 = sphi 0, %s402
      %s405 = sphi 0, %s404
      %s419 = sphi 0, %s405
      %s423 = sphi 0, %s423
      %s425 = sphi 0, %s423
      %s426 = sphi 0, %s425
      %s440 = sphi 0, %s426
      %s444 = sphi 0, %s444
      %s446 = sphi 0, %s444
      %s447 = sphi 0, %s446
      %s461 = sphi 0, %s447
      %s465 = sphi 0, %s465
      %s467 = sphi 0, %s465
      %s468 = sphi 0, %s467
      %s482 = sphi 0, %s468
      %s486 = sphi 0, %s486
      %s488 = sphi 0, %s486
      %s489 = sphi 0, %s488
      %s503 = sphi 0, %s489
      %s507 = sphi 0, %s507
      %s509 = sphi 0, %s507
      %s510 = sphi 0, %s509
      %s524 = sphi 0, %s510
      %s530 = sphi 0, %s532
      %s533 = sphi 0, %s530
      %s534 = sphi 0, %s533
      %s550 = sphi 0, %s534
    $region4: #{transformer_forward.1} parent=1 // loop_header_branch
      %47 = sbr.rel (%p45) target = $region8
    $region5: #{transformer_forward.1} parent=1 // loop_body
      %s49 = ssub.s32 %s44, 1
      %s50 = ssub.s32 %s44, 2
      %s57 = sadd.s32 1, %s52
      %p58 = scmp.ge.s32.totalorder %s57, 2
      %s59 = scalar_select %p58, 0, %s57
      %s60 = sadd.s32 1, %s51
      %s61 = scalar_select %p58, %s60, %s51
      %p62 = scmp.ge.s32.totalorder %s61, 2
      %s63 = scalar_select %p62, 0, %s61
      %s64 = ssub.s32 %s51, %s63
      %p65 = scmp.eq.s32.totalorder %s64, 0
      %s67 = sadd.s32 %s66, 1
      %s68 = scalar_select %p65, %s66, %s67
      %p71 = pneg %p65
      %p72 = scmp.eq.s32.totalorder %s44, 3
      %p73 = por %p71, %p72
      %p74 = scmp.ne.s32.totalorder %s66, %s69
      %p75 = scmp.eq.s32.totalorder %s44, 0
      %p76 = por %p74, %p75
      %p77 = scmp.ne.s32.totalorder %s66, %s69
      %p78 = scmp.eq.s32.totalorder %s49, 3
      %p79 = por %p77, %p78
      %p80 = scmp.ne.s32.totalorder %s69, %s70
      %p81 = scmp.eq.s32.totalorder %s49, 0
      %p82 = por %p80, %p81
      %p83 = scmp.ne.s32.totalorder %s69, %s70
      %p84 = scmp.eq.s32.totalorder %s50, 3
      %p85 = por %p83, %p84
      %p87 = scmp.ne.s32.totalorder %s70, %s86
      %p88 = scmp.eq.s32.totalorder %s50, 0
      %p89 = por %p87, %p88
      %s90 = ssub.s32 %s52, %s59
      %p91 = scmp.eq.s32.totalorder %s90, 0
      %s93 = sadd.s32 %s92, 1
      %s94 = scalar_select %p91, %s92, %s93
      %p97 = pneg %p91
      %p98 = scmp.eq.s32.totalorder %s44, 3
      %p99 = por %p97, %p98
      %p100 = scmp.ne.s32.totalorder %s92, %s95
      %p101 = scmp.eq.s32.totalorder %s44, 0
      %p102 = por %p100, %p101
      %p103 = scmp.ne.s32.totalorder %s92, %s95
      %p104 = scmp.eq.s32.totalorder %s49, 3
      %p105 = por %p103, %p104
      %p106 = scmp.ne.s32.totalorder %s95, %s96
      %p107 = scmp.eq.s32.totalorder %s49, 0
      %p108 = por %p106, %p107
      %p109 = scmp.ne.s32.totalorder %s95, %s96
      %p110 = scmp.eq.s32.totalorder %s50, 3
      %p111 = por %p109, %p110
      %p113 = scmp.ne.s32.totalorder %s96, %s112
      %p114 = scmp.eq.s32.totalorder %s50, 0
      %p115 = por %p113, %p114
      %s116 = ssub.s32 %s52, %s59
      %p117 = scmp.eq.s32.totalorder %s116, 0
      %s119 = sadd.s32 %s118, 1
      %s120 = scalar_select %p117, %s118, %s119
      %p123 = pneg %p117
      %p124 = scmp.eq.s32.totalorder %s44, 3
      %p125 = por %p123, %p124
      %p126 = scmp.ne.s32.totalorder %s118, %s121
      %p127 = scmp.eq.s32.totalorder %s44, 0
      %p128 = por %p126, %p127
      %p129 = scmp.ne.s32.totalorder %s118, %s121
      %p130 = scmp.eq.s32.totalorder %s49, 3
      %p131 = por %p129, %p130
      %p132 = scmp.ne.s32.totalorder %s121, %s122
      %p133 = scmp.eq.s32.totalorder %s49, 0
      %p134 = por %p132, %p133
      %p135 = scmp.ne.s32.totalorder %s121, %s122
      %p136 = scmp.eq.s32.totalorder %s50, 3
      %p137 = por %p135, %p136
      %p139 = scmp.ne.s32.totalorder %s122, %s138
      %p140 = scmp.eq.s32.totalorder %s50, 0
      %p141 = por %p139, %p140
      %s142 = ssub.s32 %s52, %s59
      %p143 = scmp.eq.s32.totalorder %s142, 0
      %s145 = sadd.s32 %s144, 1
      %s146 = scalar_select %p143, %s144, %s145
      %p149 = pneg %p143
      %p150 = scmp.eq.s32.totalorder %s44, 3
      %p151 = por %p149, %p150
      %p152 = scmp.ne.s32.totalorder %s144, %s147
      %p153 = scmp.eq.s32.totalorder %s44, 0
      %p154 = por %p152, %p153
      %p155 = scmp.ne.s32.totalorder %s144, %s147
      %p156 = scmp.eq.s32.totalorder %s49, 3
      %p157 = por %p155, %p156
      %p158 = scmp.ne.s32.totalorder %s147, %s148
      %p159 = scmp.eq.s32.totalorder %s49, 0
      %p160 = por %p158, %p159
      %p161 = scmp.ne.s32.totalorder %s147, %s148
      %p162 = scmp.eq.s32.totalorder %s50, 3
      %p163 = por %p161, %p162
      %p165 = scmp.ne.s32.totalorder %s148, %s164
      %p166 = scmp.eq.s32.totalorder %s50, 0
      %p167 = por %p165, %p166
      %s168 = ssub.s32 %s52, %s59
      %p169 = scmp.eq.s32.totalorder %s168, 0
      %s171 = sadd.s32 %s170, 1
      %s172 = scalar_select %p169, %s170, %s171
      %p175 = pneg %p169
      %p176 = scmp.eq.s32.totalorder %s44, 3
      %p177 = por %p175, %p176
      %p178 = scmp.ne.s32.totalorder %s170, %s173
      %p179 = scmp.eq.s32.totalorder %s44, 0
      %p180 = por %p178, %p179
      %p181 = scmp.ne.s32.totalorder %s170, %s173
      %p182 = scmp.eq.s32.totalorder %s49, 3
      %p183 = por %p181, %p182
      %p184 = scmp.ne.s32.totalorder %s173, %s174
      %p185 = scmp.eq.s32.totalorder %s49, 0
      %p186 = por %p184, %p185
      %p187 = scmp.ne.s32.totalorder %s173, %s174
      %p188 = scmp.eq.s32.totalorder %s50, 3
      %p189 = por %p187, %p188
      %p191 = scmp.ne.s32.totalorder %s174, %s190
      %p192 = scmp.eq.s32.totalorder %s50, 0
      %p193 = por %p191, %p192
      %s194 = ssub.s32 %s52, %s59
      %p195 = scmp.eq.s32.totalorder %s194, 0
      %s197 = sadd.s32 %s196, 1
      %s198 = scalar_select %p195, %s196, %s197
      %p201 = pneg %p195
      %p202 = scmp.eq.s32.totalorder %s44, 3
      %p203 = por %p201, %p202
      %p204 = scmp.ne.s32.totalorder %s196, %s199
      %p205 = scmp.eq.s32.totalorder %s44, 0
      %p206 = por %p204, %p205
      %p207 = scmp.ne.s32.totalorder %s196, %s199
      %p208 = scmp.eq.s32.totalorder %s49, 3
      %p209 = por %p207, %p208
      %p210 = scmp.ne.s32.totalorder %s199, %s200
      %p211 = scmp.eq.s32.totalorder %s49, 0
      %p212 = por %p210, %p211
      %p213 = scmp.ne.s32.totalorder %s199, %s200
      %p214 = scmp.eq.s32.totalorder %s50, 3
      %p215 = por %p213, %p214
      %p217 = scmp.ne.s32.totalorder %s200, %s216
      %p218 = scmp.eq.s32.totalorder %s50, 0
      %p219 = por %p217, %p218
      %s220 = ssub.s32 %s52, %s59
      %p221 = scmp.eq.s32.totalorder %s220, 0
      %s223 = sadd.s32 %s222, 1
      %s224 = scalar_select %p221, %s222, %s223
      %p227 = pneg %p221
      %p228 = scmp.eq.s32.totalorder %s44, 3
      %p229 = por %p227, %p228
      %p230 = scmp.ne.s32.totalorder %s222, %s225
      %p231 = scmp.eq.s32.totalorder %s44, 0
      %p232 = por %p230, %p231
      %p233 = scmp.ne.s32.totalorder %s222, %s225
      %p234 = scmp.eq.s32.totalorder %s49, 3
      %p235 = por %p233, %p234
      %p236 = scmp.ne.s32.totalorder %s225, %s226
      %p237 = scmp.eq.s32.totalorder %s49, 0
      %p238 = por %p236, %p237
      %p239 = scmp.ne.s32.totalorder %s225, %s226
      %p240 = scmp.eq.s32.totalorder %s50, 3
      %p241 = por %p239, %p240
      %p243 = scmp.ne.s32.totalorder %s226, %s242
      %p244 = scmp.eq.s32.totalorder %s50, 0
      %p245 = por %p243, %p244
      %s246 = ssub.s32 %s52, %s59
      %p247 = scmp.eq.s32.totalorder %s246, 0
      %s249 = sadd.s32 %s248, 1
      %s250 = scalar_select %p247, %s248, %s249
      %p253 = pneg %p247
      %p254 = scmp.eq.s32.totalorder %s44, 3
      %p255 = por %p253, %p254
      %p256 = scmp.ne.s32.totalorder %s248, %s251
      %p257 = scmp.eq.s32.totalorder %s44, 0
      %p258 = por %p256, %p257
      %p259 = scmp.ne.s32.totalorder %s248, %s251
      %p260 = scmp.eq.s32.totalorder %s49, 3
      %p261 = por %p259, %p260
      %p262 = scmp.ne.s32.totalorder %s251, %s252
      %p263 = scmp.eq.s32.totalorder %s49, 0
      %p264 = por %p262, %p263
      %p265 = scmp.ne.s32.totalorder %s251, %s252
      %p266 = scmp.eq.s32.totalorder %s50, 3
      %p267 = por %p265, %p266
      %p269 = scmp.ne.s32.totalorder %s252, %s268
      %p270 = scmp.eq.s32.totalorder %s50, 0
      %p271 = por %p269, %p270
      %s272 = ssub.s32 %s52, %s59
      %p273 = scmp.eq.s32.totalorder %s272, 0
      %s275 = sadd.s32 %s274, 1
      %s276 = scalar_select %p273, %s274, %s275
      %p279 = pneg %p273
      %p280 = scmp.eq.s32.totalorder %s44, 3
      %p281 = por %p279, %p280
      %p282 = scmp.ne.s32.totalorder %s274, %s277
      %p283 = scmp.eq.s32.totalorder %s44, 0
      %p284 = por %p282, %p283
      %p285 = scmp.ne.s32.totalorder %s274, %s277
      %p286 = scmp.eq.s32.totalorder %s49, 3
      %p287 = por %p285, %p286
      %p288 = scmp.ne.s32.totalorder %s277, %s278
      %p289 = scmp.eq.s32.totalorder %s49, 0
      %p290 = por %p288, %p289
      %p291 = scmp.ne.s32.totalorder %s277, %s278
      %p292 = scmp.eq.s32.totalorder %s50, 3
      %p293 = por %p291, %p292
      %p295 = scmp.ne.s32.totalorder %s278, %s294
      %p296 = scmp.eq.s32.totalorder %s50, 0
      %p297 = por %p295, %p296
      %s298 = ssub.s32 %s52, %s59
      %p299 = scmp.eq.s32.totalorder %s298, 0
      %s301 = sadd.s32 %s300, 1
      %s302 = scalar_select %p299, %s300, %s301
      %p305 = pneg %p299
      %p306 = scmp.eq.s32.totalorder %s44, 3
      %p307 = por %p305, %p306
      %p308 = scmp.ne.s32.totalorder %s300, %s303
      %p309 = scmp.eq.s32.totalorder %s44, 0
      %p310 = por %p308, %p309
      %p311 = scmp.ne.s32.totalorder %s300, %s303
      %p312 = scmp.eq.s32.totalorder %s49, 3
      %p313 = por %p311, %p312
      %p314 = scmp.ne.s32.totalorder %s303, %s304
      %p315 = scmp.eq.s32.totalorder %s49, 0
      %p316 = por %p314, %p315
      %p317 = scmp.ne.s32.totalorder %s303, %s304
      %p318 = scmp.eq.s32.totalorder %s50, 3
      %p319 = por %p317, %p318
      %p321 = scmp.ne.s32.totalorder %s304, %s320
      %p322 = scmp.eq.s32.totalorder %s50, 0
      %p323 = por %p321, %p322
      %s324 = ssub.s32 %s52, %s59
      %p325 = scmp.eq.s32.totalorder %s324, 0
      %s327 = sadd.s32 %s326, 1
      %s328 = scalar_select %p325, %s326, %s327
      %p331 = pneg %p325
      %p332 = scmp.eq.s32.totalorder %s44, 3
      %p333 = por %p331, %p332
      %p334 = scmp.ne.s32.totalorder %s326, %s329
      %p335 = scmp.eq.s32.totalorder %s44, 0
      %p336 = por %p334, %p335
      %p337 = scmp.ne.s32.totalorder %s326, %s329
      %p338 = scmp.eq.s32.totalorder %s49, 3
      %p339 = por %p337, %p338
      %p340 = scmp.ne.s32.totalorder %s329, %s330
      %p341 = scmp.eq.s32.totalorder %s49, 0
      %p342 = por %p340, %p341
      %p343 = scmp.ne.s32.totalorder %s329, %s330
      %p344 = scmp.eq.s32.totalorder %s50, 3
      %p345 = por %p343, %p344
      %p347 = scmp.ne.s32.totalorder %s330, %s346
      %p348 = scmp.eq.s32.totalorder %s50, 0
      %p349 = por %p347, %p348
      %s350 = ssub.s32 %s52, %s59
      %p351 = scmp.eq.s32.totalorder %s350, 0
      %s353 = sadd.s32 %s352, 1
      %s354 = scalar_select %p351, %s352, %s353
      %p357 = pneg %p351
      %p358 = scmp.eq.s32.totalorder %s44, 3
      %p359 = por %p357, %p358
      %p360 = scmp.ne.s32.totalorder %s352, %s355
      %p361 = scmp.eq.s32.totalorder %s44, 0
      %p362 = por %p360, %p361
      %p363 = scmp.ne.s32.totalorder %s352, %s355
      %p364 = scmp.eq.s32.totalorder %s49, 3
      %p365 = por %p363, %p364
      %p366 = scmp.ne.s32.totalorder %s355, %s356
      %p367 = scmp.eq.s32.totalorder %s49, 0
      %p368 = por %p366, %p367
      %p369 = scmp.ne.s32.totalorder %s355, %s356
      %p370 = scmp.eq.s32.totalorder %s50, 3
      %p371 = por %p369, %p370
      %p373 = scmp.ne.s32.totalorder %s356, %s372
      %p374 = scmp.eq.s32.totalorder %s50, 0
      %p375 = por %p373, %p374
      %s376 = ssub.s32 %s52, %s59
      %p377 = scmp.eq.s32.totalorder %s376, 0
      %s379 = sadd.s32 %s378, 1
      %s380 = scalar_select %p377, %s378, %s379
      %p383 = pneg %p377
      %p384 = scmp.eq.s32.totalorder %s44, 3
      %p385 = por %p383, %p384
      %p386 = scmp.ne.s32.totalorder %s378, %s381
      %p387 = scmp.eq.s32.totalorder %s44, 0
      %p388 = por %p386, %p387
      %p389 = scmp.ne.s32.totalorder %s378, %s381
      %p390 = scmp.eq.s32.totalorder %s49, 3
      %p391 = por %p389, %p390
      %p392 = scmp.ne.s32.totalorder %s381, %s382
      %p393 = scmp.eq.s32.totalorder %s49, 0
      %p394 = por %p392, %p393
      %p395 = scmp.ne.s32.totalorder %s381, %s382
      %p396 = scmp.eq.s32.totalorder %s50, 3
      %p397 = por %p395, %p396
      %p399 = scmp.ne.s32.totalorder %s382, %s398
      %p400 = scmp.eq.s32.totalorder %s50, 0
      %p401 = por %p399, %p400
      %s403 = sadd.s32 %s402, 1
      %p406 = scmp.eq.s32.totalorder %s44, 3
      %p407 = scmp.ne.s32.totalorder %s402, %s404
      %p408 = scmp.eq.s32.totalorder %s44, 0
      %p409 = por %p407, %p408
      %p410 = scmp.ne.s32.totalorder %s402, %s404
      %p411 = scmp.eq.s32.totalorder %s49, 3
      %p412 = por %p410, %p411
      %p413 = scmp.ne.s32.totalorder %s404, %s405
      %p414 = scmp.eq.s32.totalorder %s49, 0
      %p415 = por %p413, %p414
      %p416 = scmp.ne.s32.totalorder %s404, %s405
      %p417 = scmp.eq.s32.totalorder %s50, 3
      %p418 = por %p416, %p417
      %p420 = scmp.ne.s32.totalorder %s405, %s419
      %p421 = scmp.eq.s32.totalorder %s50, 0
      %p422 = por %p420, %p421
      %s424 = sadd.s32 %s423, 1
      %p427 = scmp.eq.s32.totalorder %s44, 3
      %p428 = scmp.ne.s32.totalorder %s423, %s425
      %p429 = scmp.eq.s32.totalorder %s44, 0
      %p430 = por %p428, %p429
      %p431 = scmp.ne.s32.totalorder %s423, %s425
      %p432 = scmp.eq.s32.totalorder %s49, 3
      %p433 = por %p431, %p432
      %p434 = scmp.ne.s32.totalorder %s425, %s426
      %p435 = scmp.eq.s32.totalorder %s49, 0
      %p436 = por %p434, %p435
      %p437 = scmp.ne.s32.totalorder %s425, %s426
      %p438 = scmp.eq.s32.totalorder %s50, 3
      %p439 = por %p437, %p438
      %p441 = scmp.ne.s32.totalorder %s426, %s440
      %p442 = scmp.eq.s32.totalorder %s50, 0
      %p443 = por %p441, %p442
      %s445 = sadd.s32 %s444, 1
      %p448 = scmp.eq.s32.totalorder %s44, 3
      %p449 = scmp.ne.s32.totalorder %s444, %s446
      %p450 = scmp.eq.s32.totalorder %s44, 0
      %p451 = por %p449, %p450
      %p452 = scmp.ne.s32.totalorder %s444, %s446
      %p453 = scmp.eq.s32.totalorder %s49, 3
      %p454 = por %p452, %p453
      %p455 = scmp.ne.s32.totalorder %s446, %s447
      %p456 = scmp.eq.s32.totalorder %s49, 0
      %p457 = por %p455, %p456
      %p458 = scmp.ne.s32.totalorder %s446, %s447
      %p459 = scmp.eq.s32.totalorder %s50, 3
      %p460 = por %p458, %p459
      %p462 = scmp.ne.s32.totalorder %s447, %s461
      %p463 = scmp.eq.s32.totalorder %s50, 0
      %p464 = por %p462, %p463
      %s466 = sadd.s32 %s465, 1
      %p469 = scmp.eq.s32.totalorder %s44, 3
      %p470 = scmp.ne.s32.totalorder %s465, %s467
      %p471 = scmp.eq.s32.totalorder %s44, 0
      %p472 = por %p470, %p471
      %p473 = scmp.ne.s32.totalorder %s465, %s467
      %p474 = scmp.eq.s32.totalorder %s49, 3
      %p475 = por %p473, %p474
      %p476 = scmp.ne.s32.totalorder %s467, %s468
      %p477 = scmp.eq.s32.totalorder %s49, 0
      %p478 = por %p476, %p477
      %p479 = scmp.ne.s32.totalorder %s467, %s468
      %p480 = scmp.eq.s32.totalorder %s50, 3
      %p481 = por %p479, %p480
      %p483 = scmp.ne.s32.totalorder %s468, %s482
      %p484 = scmp.eq.s32.totalorder %s50, 0
      %p485 = por %p483, %p484
      %s487 = sadd.s32 %s486, 1
      %p490 = scmp.eq.s32.totalorder %s44, 3
      %p491 = scmp.ne.s32.totalorder %s486, %s488
      %p492 = scmp.eq.s32.totalorder %s44, 0
      %p493 = por %p491, %p492
      %p494 = scmp.ne.s32.totalorder %s486, %s488
      %p495 = scmp.eq.s32.totalorder %s49, 3
      %p496 = por %p494, %p495
      %p497 = scmp.ne.s32.totalorder %s488, %s489
      %p498 = scmp.eq.s32.totalorder %s49, 0
      %p499 = por %p497, %p498
      %p500 = scmp.ne.s32.totalorder %s488, %s489
      %p501 = scmp.eq.s32.totalorder %s50, 3
      %p502 = por %p500, %p501
      %p504 = scmp.ne.s32.totalorder %s489, %s503
      %p505 = scmp.eq.s32.totalorder %s50, 0
      %p506 = por %p504, %p505
      %s508 = sadd.s32 %s507, 1
      %p511 = scmp.eq.s32.totalorder %s44, 3
      %p512 = scmp.ne.s32.totalorder %s507, %s509
      %p513 = scmp.eq.s32.totalorder %s44, 0
      %p514 = por %p512, %p513
      %p515 = scmp.ne.s32.totalorder %s507, %s509
      %p516 = scmp.eq.s32.totalorder %s49, 3
      %p517 = por %p515, %p516
      %p518 = scmp.ne.s32.totalorder %s509, %s510
      %p519 = scmp.eq.s32.totalorder %s49, 0
      %p520 = por %p518, %p519
      %p521 = scmp.ne.s32.totalorder %s509, %s510
      %p522 = scmp.eq.s32.totalorder %s50, 3
      %p523 = por %p521, %p522
      %p525 = scmp.ne.s32.totalorder %s510, %s524
      %p526 = scmp.eq.s32.totalorder %s50, 0
      %p527 = por %p525, %p526
      %s528 = ssub.s32 %s51, %s63
      %p529 = scmp.eq.s32.totalorder %s528, 0
      %s531 = sadd.s32 %s530, 1
      %s532 = scalar_select %p529, %s530, %s531
      %p535 = pneg %p529
      %p536 = scmp.eq.s32.totalorder %s44, 3
      %p537 = por %p535, %p536
      %p538 = scmp.ne.s32.totalorder %s530, %s533
      %p539 = scmp.eq.s32.totalorder %s44, 0
      %p540 = por %p538, %p539
      %p541 = scmp.ne.s32.totalorder %s530, %s533
      %p542 = scmp.eq.s32.totalorder %s49, 3
      %p543 = por %p541, %p542
      %p544 = scmp.ne.s32.totalorder %s533, %s534
      %p545 = scmp.eq.s32.totalorder %s49, 0
      %p546 = por %p544, %p545
      %p547 = scmp.ne.s32.totalorder %s533, %s534
      %p548 = scmp.eq.s32.totalorder %s50, 3
      %p549 = por %p547, %p548
      %p551 = scmp.ne.s32.totalorder %s534, %s550
      %p552 = scmp.eq.s32.totalorder %s50, 0
      %p553 = por %p551, %p552
      %p554 = scmp.le.s32.totalorder 1, %s44
      %p555 = scmp.lt.s32.totalorder %s44, 5
      %p556 = pnand %p554, %p555
      %p557 = pneg %p556
      // Predicated region
      $region9: #{transformer_forward.1} parent=5 // pred_check
        _
      $region10: #{transformer_forward.1} parent=5 // pred_check_branch
        %559 = sbr.rel (%p556) target = $region12
      $region11: #{transformer_forward.1} parent=5 // pred_region
        %s560 = ssub.s32 %s44, 1
        // Predicated region
        $region13: #{transformer_forward.1} parent=11 // pred_check
          %p561 = pneg %p415
        $region14: #{transformer_forward.1} parent=11 // pred_check_branch
          %563 = sbr.rel (%p561) target = $region16
        $region15: #{transformer_forward.1} parent=11 // pred_region
          _
        $region16: #{transformer_forward.1} parent=11 // pred_fallthru
          _
        // Predicated region
        $region17: #{transformer_forward.1} parent=11 // pred_check
          %p564 = pneg %p436
        $region18: #{transformer_forward.1} parent=11 // pred_check_branch
          %566 = sbr.rel (%p564) target = $region20
        $region19: #{transformer_forward.1} parent=11 // pred_region
          %s568 = ssub.s32 16, 16
          %569 = vsyncadd [#allocation19], %s568
          %s571 = sshll.u32 [#allocation18], 4
          %s572 = int_to_ptr.vmem [resolvable:$true] %s571
          %574 = dma.hbm_to_vmem [thread:$0]  %s14, 16, %s572, [#allocation19]
        $region20: #{transformer_forward.1} parent=11 // pred_fallthru
          _
        // Predicated region
        $region21: #{transformer_forward.1} parent=11 // pred_check
          %p575 = pneg %p457
        $region22: #{transformer_forward.1} parent=11 // pred_check_branch
          %577 = sbr.rel (%p575) target = $region24
        $region23: #{transformer_forward.1} parent=11 // pred_region
          _
        $region24: #{transformer_forward.1} parent=11 // pred_fallthru
          _
        // Predicated region
        $region25: #{transformer_forward.1} parent=11 // pred_check
          %p578 = pneg %p478
        $region26: #{transformer_forward.1} parent=11 // pred_check_branch
          %580 = sbr.rel (%p578) target = $region28
        $region27: #{transformer_forward.1} parent=11 // pred_region
          %s582 = ssub.s32 16, 16
          %583 = vsyncadd [#allocation19], %s582
          %s585 = sshll.u32 [#allocation20], 4
          %s586 = int_to_ptr.vmem [resolvable:$true] %s585
          %588 = dma.hbm_to_vmem [thread:$0]  %s16, 16, %s586, [#allocation19]
        $region28: #{transformer_forward.1} parent=11 // pred_fallthru
          _
        // Predicated region
        $region29: #{transformer_forward.1} parent=11 // pred_check
          %p589 = pneg %p499
        $region30: #{transformer_forward.1} parent=11 // pred_check_branch
          %591 = sbr.rel (%p589) target = $region32
        $region31: #{transformer_forward.1} parent=11 // pred_region
          %s593 = ssub.s32 16, 16
          %594 = vsyncadd [#allocation22], %s593
          %s596 = sshll.u32 [#allocation21], 4
          %s597 = int_to_ptr.vmem [resolvable:$true] %s596
          %599 = dma.hbm_to_vmem [thread:$0]  %s17, 16, %s597, [#allocation22]
        $region32: #{transformer_forward.1} parent=11 // pred_fallthru
          _
        // Predicated region
        $region33: #{transformer_forward.1} parent=11 // pred_check
          %p600 = pneg %p520
        $region34: #{transformer_forward.1} parent=11 // pred_check_branch
          %602 = sbr.rel (%p600) target = $region36
        $region35: #{transformer_forward.1} parent=11 // pred_region
          _
        $region36: #{transformer_forward.1} parent=11 // pred_fallthru
          _
      $region12: #{transformer_forward.1} parent=5 // pred_fallthru
        _
      %p603 = scmp.lt.s32.totalorder %s44, 4
      // Predicated region
      $region37: #{transformer_forward.1} parent=5 // pred_check
        %p604 = pneg %p603
      $region38: #{transformer_forward.1} parent=5 // pred_check_branch
        %606 = sbr.rel (%p604) target = $region40
      $region39: #{transformer_forward.1} parent=5 // pred_region
        // Predicated region
        $region41: #{transformer_forward.1} parent=39 // pred_check
          %p607 = pneg %p76
        $region42: #{transformer_forward.1} parent=39 // pred_check_branch
          %609 = sbr.rel (%p607) target = $region44
        $region43: #{transformer_forward.1} parent=39 // pred_region
          %p610 = scmp.lt.s32.totalorder %s51, 1
          %s611 = scalar_select %p610, %s51, 1
          %s612 = smul.addr %s611, 8
          %s613 = scalar_lea.vmem %s0, %s612
        $region44: #{transformer_forward.1} parent=39 // pred_fallthru
          _
        // Predicated region
        $region45: #{transformer_forward.1} parent=39 // pred_check
          %p614 = pneg %p102
        $region46: #{transformer_forward.1} parent=39 // pred_check_branch
          %616 = sbr.rel (%p614) target = $region48
        $region47: #{transformer_forward.1} parent=39 // pred_region
          %s617 = sand.u32 %s92, 1
          %s618 = scalar_lea.sflag [#allocation5], %s617
          %s619 = sand.u32 %s92, 1
          %s620 = smul.addr %s619, 64
          %s621 = scalar_lea.vmem [#allocation4], %s620
          %s623 = ssub.s32 1024, 1024
          %624 = vsyncadd %s618, %s623
          %s625 = smul.addr %s52, 16
          %s626 = smul.addr %s625, 64
          %s627 = scalar_lea.hbm %s1, %s626
          %s628 = sshll.u32 %s621, 4
          %s629 = int_to_ptr.vmem [resolvable:$true] %s628
          %634 = dma.hbm_to_vmem [thread:$0]  %s627, 1024, %s629, %s618, 128, 128, 8
        $region48: #{transformer_forward.1} parent=39 // pred_fallthru
          _
        // Predicated region
        $region49: #{transformer_forward.1} parent=39 // pred_check
          %p635 = pneg %p128
        $region50: #{transformer_forward.1} parent=39 // pred_check_branch
          %637 = sbr.rel (%p635) target = $region52
        $region51: #{transformer_forward.1} parent=39 // pred_region
          %p638 = scmp.lt.s32.totalorder %s52, 1
          %s639 = scalar_select %p638, %s52, 1
          %s640 = smul.addr %s639, 2
          %s641 = scalar_lea.vmem %s2, %s640
        $region52: #{transformer_forward.1} parent=39 // pred_fallthru
          _
        // Predicated region
        $region53: #{transformer_forward.1} parent=39 // pred_check
          %p642 = pneg %p154
        $region54: #{transformer_forward.1} parent=39 // pred_check_branch
          %644 = sbr.rel (%p642) target = $region56
        $region55: #{transformer_forward.1} parent=39 // pred_region
          %p645 = scmp.lt.s32.totalorder %s52, 1
          %s646 = scalar_select %p645, %s52, 1
          %s647 = smul.addr %s646, 8
          %s648 = smul.addr %s647, 4
          %s649 = scalar_lea.vmem %s3, %s648
        $region56: #{transformer_forward.1} parent=39 // pred_fallthru
          _
        // Predicated region
        $region57: #{transformer_forward.1} parent=39 // pred_check
          %p650 = pneg %p180
        $region58: #{transformer_forward.1} parent=39 // pred_check_branch
          %652 = sbr.rel (%p650) target = $region60
        $region59: #{transformer_forward.1} parent=39 // pred_region
          %p653 = scmp.lt.s32.totalorder %s52, 1
          %s654 = scalar_select %p653, %s52, 1
          %s655 = scalar_lea.vmem %s4, %s654
        $region60: #{transformer_forward.1} parent=39 // pred_fallthru
          _
        // Predicated region
        $region61: #{transformer_forward.1} parent=39 // pred_check
          %p656 = pneg %p206
        $region62: #{transformer_forward.1} parent=39 // pred_check_branch
          %658 = sbr.rel (%p656) target = $region64
        $region63: #{transformer_forward.1} parent=39 // pred_region
          %s659 = sand.u32 %s44, 1
          %s660 = scalar_lea.sflag [#allocation7], %s659
          %s661 = sand.u32 %s196, 1
          %s662 = smul.addr %s661, 32
          %s663 = scalar_lea.vmem [#allocation6], %s662
          %s665 = ssub.s32 512, 512
          %666 = vsyncadd %s660, %s665
          %s667 = smul.addr %s52, 8
          %s668 = smul.addr %s667, 64
          %s669 = scalar_lea.hbm %s5, %s668
          %s670 = sshll.u32 %s663, 4
          %s671 = int_to_ptr.vmem [resolvable:$true] %s670
          %676 = dma.hbm_to_vmem [thread:$0]  %s669, 512, %s671, %s660, 64, 64, 4
        $region64: #{transformer_forward.1} parent=39 // pred_fallthru
          _
        // Predicated region
        $region65: #{transformer_forward.1} parent=39 // pred_check
          %p677 = pneg %p232
        $region66: #{transformer_forward.1} parent=39 // pred_check_branch
          %679 = sbr.rel (%p677) target = $region68
        $region67: #{transformer_forward.1} parent=39 // pred_region
          %s680 = sand.u32 %s44, 1
          %s681 = scalar_lea.sflag [#allocation7], %s680
          %s682 = sand.u32 %s222, 1
          %s683 = scalar_lea.vmem [#allocation8], %s682
          %s685 = ssub.s32 16, 16
          %686 = vsyncadd %s681, %s685
          %s687 = smul.addr %s52, 16
          %s688 = scalar_lea.hbm %s6, %s687
          %s690 = sshll.u32 %s683, 4
          %s691 = int_to_ptr.vmem [resolvable:$true] %s690
          %693 = dma.hbm_to_vmem [thread:$0]  %s688, 16, %s691, %s681
        $region68: #{transformer_forward.1} parent=39 // pred_fallthru
          _
        // Predicated region
        $region69: #{transformer_forward.1} parent=39 // pred_check
          %p694 = pneg %p258
        $region70: #{transformer_forward.1} parent=39 // pred_check_branch
          %696 = sbr.rel (%p694) target = $region72
        $region71: #{transformer_forward.1} parent=39 // pred_region
          %s697 = sand.u32 %s44, 1
          %s698 = scalar_lea.sflag [#allocation10], %s697
          %s699 = sand.u32 %s248, 1
          %s700 = smul.addr %s699, 32
          %s701 = scalar_lea.vmem [#allocation9], %s700
          %s703 = ssub.s32 512, 512
          %704 = vsyncadd %s698, %s703
          %s705 = smul.addr %s52, 8
          %s706 = smul.addr %s705, 64
          %s707 = scalar_lea.hbm %s7, %s706
          %s708 = sshll.u32 %s701, 4
          %s709 = int_to_ptr.vmem [resolvable:$true] %s708
          %714 = dma.hbm_to_vmem [thread:$0]  %s707, 512, %s709, %s698, 64, 64, 4
        $region72: #{transformer_forward.1} parent=39 // pred_fallthru
          _
        // Predicated region
        $region73: #{transformer_forward.1} parent=39 // pred_check
          %p715 = pneg %p284
        $region74: #{transformer_forward.1} parent=39 // pred_check_branch
          %717 = sbr.rel (%p715) target = $region76
        $region75: #{transformer_forward.1} parent=39 // pred_region
          %s718 = sand.u32 %s44, 1
          %s719 = scalar_lea.sflag [#allocation10], %s718
          %s720 = sand.u32 %s274, 1
          %s721 = scalar_lea.vmem [#allocation11], %s720
          %s723 = ssub.s32 16, 16
          %724 = vsyncadd %s719, %s723
          %s725 = smul.addr %s52, 16
          %s726 = scalar_lea.hbm %s8, %s725
          %s728 = sshll.u32 %s721, 4
          %s729 = int_to_ptr.vmem [resolvable:$true] %s728
          %731 = dma.hbm_to_vmem [thread:$0]  %s726, 16, %s729, %s719
        $region76: #{transformer_forward.1} parent=39 // pred_fallthru
          _
        // Predicated region
        $region77: #{transformer_forward.1} parent=39 // pred_check
          %p732 = pneg %p310
        $region78: #{transformer_forward.1} parent=39 // pred_check_branch
          %734 = sbr.rel (%p732) target = $region80
        $region79: #{transformer_forward.1} parent=39 // pred_region
          %s735 = sand.u32 %s44, 1
          %s736 = scalar_lea.sflag [#allocation13], %s735
          %s737 = sand.u32 %s300, 1
          %s738 = scalar_lea.vmem [#allocation12], %s737
          %s740 = ssub.s32 16, 16
          %741 = vsyncadd %s736, %s740
          %s742 = smul.addr %s52, 16
          %s743 = scalar_lea.hbm %s9, %s742
          %s745 = sshll.u32 %s738, 4
          %s746 = int_to_ptr.vmem [resolvable:$true] %s745
          %748 = dma.hbm_to_vmem [thread:$0]  %s743, 16, %s746, %s736
        $region80: #{transformer_forward.1} parent=39 // pred_fallthru
          _
        // Predicated region
        $region81: #{transformer_forward.1} parent=39 // pred_check
          %p749 = pneg %p336
        $region82: #{transformer_forward.1} parent=39 // pred_check_branch
          %751 = sbr.rel (%p749) target = $region84
        $region83: #{transformer_forward.1} parent=39 // pred_region
          %s752 = sand.u32 %s44, 1
          %s753 = scalar_lea.sflag [#allocation13], %s752
          %s754 = sand.u32 %s326, 1
          %s755 = scalar_lea.vmem [#allocation14], %s754
          %s757 = ssub.s32 16, 16
          %758 = vsyncadd %s753, %s757
          %s759 = smul.addr %s52, 16
          %s760 = scalar_lea.hbm %s10, %s759
          %s762 = sshll.u32 %s755, 4
          %s763 = int_to_ptr.vmem [resolvable:$true] %s762
          %765 = dma.hbm_to_vmem [thread:$0]  %s760, 16, %s763, %s753
        $region84: #{transformer_forward.1} parent=39 // pred_fallthru
          _
        // Predicated region
        $region85: #{transformer_forward.1} parent=39 // pred_check
          %p766 = pneg %p362
        $region86: #{transformer_forward.1} parent=39 // pred_check_branch
          %768 = sbr.rel (%p766) target = $region88
        $region87: #{transformer_forward.1} parent=39 // pred_region
          %s769 = sand.u32 %s44, 1
          %s770 = scalar_lea.sflag [#allocation16], %s769
          %s771 = sand.u32 %s352, 1
          %s772 = scalar_lea.vmem [#allocation15], %s771
          %s774 = ssub.s32 16, 16
          %775 = vsyncadd %s770, %s774
          %s776 = smul.addr %s52, 16
          %s777 = scalar_lea.hbm %s11, %s776
          %s779 = sshll.u32 %s772, 4
          %s780 = int_to_ptr.vmem [resolvable:$true] %s779
          %782 = dma.hbm_to_vmem [thread:$0]  %s777, 16, %s780, %s770
        $region88: #{transformer_forward.1} parent=39 // pred_fallthru
          _
        // Predicated region
        $region89: #{transformer_forward.1} parent=39 // pred_check
          %p783 = pneg %p388
        $region90: #{transformer_forward.1} parent=39 // pred_check_branch
          %785 = sbr.rel (%p783) target = $region92
        $region91: #{transformer_forward.1} parent=39 // pred_region
          %s786 = sand.u32 %s44, 1
          %s787 = scalar_lea.sflag [#allocation16], %s786
          %s788 = sand.u32 %s378, 1
          %s789 = scalar_lea.vmem [#allocation17], %s788
          %s791 = ssub.s32 16, 16
          %792 = vsyncadd %s787, %s791
          %s793 = smul.addr %s52, 16
          %s794 = scalar_lea.hbm %s12, %s793
          %s796 = sshll.u32 %s789, 4
          %s797 = int_to_ptr.vmem [resolvable:$true] %s796
          %799 = dma.hbm_to_vmem [thread:$0]  %s794, 16, %s797, %s787
        $region92: #{transformer_forward.1} parent=39 // pred_fallthru
          _
      $region40: #{transformer_forward.1} parent=5 // pred_fallthru
        _
      %p800 = scmp.le.s32.totalorder 1, %s44
      %p801 = scmp.lt.s32.totalorder %s44, 5
      %p802 = pnand %p800, %p801
      %p803 = pneg %p802
      // Predicated region
      $region93: #{transformer_forward.1} parent=5 // pred_check
        _
      $region94: #{transformer_forward.1} parent=5 // pred_check_branch
        %805 = sbr.rel (%p802) target = $region96
      $region95: #{transformer_forward.1} parent=5 // pred_region
        %s806 = ssub.s32 %s44, 1
        %s807 = sand.u32 %s95, 1
        %s808 = scalar_lea.sflag [#allocation5], %s807
        %s809 = sand.u32 %s95, 1
        %s810 = smul.addr %s809, 64
        %s811 = scalar_lea.vmem [#allocation4], %s810
        // Predicated region
        $region97: #{transformer_forward.1} parent=95 // pred_check
          %p812 = pneg %p108
        $region98: #{transformer_forward.1} parent=95 // pred_check_branch
          %814 = sbr.rel (%p812) target = $region100
        $region99: #{transformer_forward.1} parent=95 // pred_region
          %815 = dma.done %s808, 1024
        $region100: #{transformer_forward.1} parent=95 // pred_fallthru
          _
        %s816 = sand.u32 %s49, 1
        %s817 = scalar_lea.sflag [#allocation7], %s816
        %s818 = sand.u32 %s199, 1
        %s819 = smul.addr %s818, 32
        %s820 = scalar_lea.vmem [#allocation6], %s819
        // Predicated region
        $region101: #{transformer_forward.1} parent=95 // pred_check
          %p821 = pneg %p212
        $region102: #{transformer_forward.1} parent=95 // pred_check_branch
          %823 = sbr.rel (%p821) target = $region104
        $region103: #{transformer_forward.1} parent=95 // pred_region
          %824 = dma.done %s817, 512
        $region104: #{transformer_forward.1} parent=95 // pred_fallthru
          _
        %s825 = sand.u32 %s49, 1
        %s826 = scalar_lea.sflag [#allocation7], %s825
        %s827 = sand.u32 %s225, 1
        %s828 = scalar_lea.vmem [#allocation8], %s827
        // Predicated region
        $region105: #{transformer_forward.1} parent=95 // pred_check
          %p829 = pneg %p238
        $region106: #{transformer_forward.1} parent=95 // pred_check_branch
          %831 = sbr.rel (%p829) target = $region108
        $region107: #{transformer_forward.1} parent=95 // pred_region
          %832 = dma.done %s826, 16
        $region108: #{transformer_forward.1} parent=95 // pred_fallthru
          _
        %s833 = sand.u32 %s49, 1
        %s834 = scalar_lea.sflag [#allocation10], %s833
        %s835 = sand.u32 %s251, 1
        %s836 = smul.addr %s835, 32
        %s837 = scalar_lea.vmem [#allocation9], %s836
        // Predicated region
        $region109: #{transformer_forward.1} parent=95 // pred_check
          %p838 = pneg %p264
        $region110: #{transformer_forward.1} parent=95 // pred_check_branch
          %840 = sbr.rel (%p838) target = $region112
        $region111: #{transformer_forward.1} parent=95 // pred_region
          %841 = dma.done %s834, 512
        $region112: #{transformer_forward.1} parent=95 // pred_fallthru
          _
        %s842 = sand.u32 %s49, 1
        %s843 = scalar_lea.sflag [#allocation10], %s842
        %s844 = sand.u32 %s277, 1
        %s845 = scalar_lea.vmem [#allocation11], %s844
        // Predicated region
        $region113: #{transformer_forward.1} parent=95 // pred_check
          %p846 = pneg %p290
        $region114: #{transformer_forward.1} parent=95 // pred_check_branch
          %848 = sbr.rel (%p846) target = $region116
        $region115: #{transformer_forward.1} parent=95 // pred_region
          %849 = dma.done %s843, 16
        $region116: #{transformer_forward.1} parent=95 // pred_fallthru
          _
        %s850 = sand.u32 %s49, 1
        %s851 = scalar_lea.sflag [#allocation13], %s850
        %s852 = sand.u32 %s303, 1
        %s853 = scalar_lea.vmem [#allocation12], %s852
        // Predicated region
        $region117: #{transformer_forward.1} parent=95 // pred_check
          %p854 = pneg %p316
        $region118: #{transformer_forward.1} parent=95 // pred_check_branch
          %856 = sbr.rel (%p854) target = $region120
        $region119: #{transformer_forward.1} parent=95 // pred_region
          %857 = dma.done %s851, 16
        $region120: #{transformer_forward.1} parent=95 // pred_fallthru
          _
        %s858 = sand.u32 %s49, 1
        %s859 = scalar_lea.sflag [#allocation13], %s858
        %s860 = sand.u32 %s329, 1
        %s861 = scalar_lea.vmem [#allocation14], %s860
        // Predicated region
        $region121: #{transformer_forward.1} parent=95 // pred_check
          %p862 = pneg %p342
        $region122: #{transformer_forward.1} parent=95 // pred_check_branch
          %864 = sbr.rel (%p862) target = $region124
        $region123: #{transformer_forward.1} parent=95 // pred_region
          %865 = dma.done %s859, 16
        $region124: #{transformer_forward.1} parent=95 // pred_fallthru
          _
        %s866 = sand.u32 %s49, 1
        %s867 = scalar_lea.sflag [#allocation16], %s866
        %s868 = sand.u32 %s355, 1
        %s869 = scalar_lea.vmem [#allocation15], %s868
        // Predicated region
        $region125: #{transformer_forward.1} parent=95 // pred_check
          %p870 = pneg %p368
        $region126: #{transformer_forward.1} parent=95 // pred_check_branch
          %872 = sbr.rel (%p870) target = $region128
        $region127: #{transformer_forward.1} parent=95 // pred_region
          %873 = dma.done %s867, 16
        $region128: #{transformer_forward.1} parent=95 // pred_fallthru
          _
        %s874 = sand.u32 %s49, 1
        %s875 = scalar_lea.sflag [#allocation16], %s874
        %s876 = sand.u32 %s381, 1
        %s877 = scalar_lea.vmem [#allocation17], %s876
        // Predicated region
        $region129: #{transformer_forward.1} parent=95 // pred_check
          %p878 = pneg %p394
        $region130: #{transformer_forward.1} parent=95 // pred_check_branch
          %880 = sbr.rel (%p878) target = $region132
        $region131: #{transformer_forward.1} parent=95 // pred_region
          %881 = dma.done %s875, 16
        $region132: #{transformer_forward.1} parent=95 // pred_fallthru
          _
        // Predicated region
        $region133: #{transformer_forward.1} parent=95 // pred_check
          %p882 = pneg %p436
        $region134: #{transformer_forward.1} parent=95 // pred_check_branch
          %884 = sbr.rel (%p882) target = $region136
        $region135: #{transformer_forward.1} parent=95 // pred_region
          %885 = dma.done [#allocation19], 16
        $region136: #{transformer_forward.1} parent=95 // pred_fallthru
          _
        // Predicated region
        $region137: #{transformer_forward.1} parent=95 // pred_check
          %p886 = pneg %p478
        $region138: #{transformer_forward.1} parent=95 // pred_check_branch
          %888 = sbr.rel (%p886) target = $region140
        $region139: #{transformer_forward.1} parent=95 // pred_region
          %889 = dma.done [#allocation19], 16
        $region140: #{transformer_forward.1} parent=95 // pred_fallthru
          _
        // Predicated region
        $region141: #{transformer_forward.1} parent=95 // pred_check
          %p890 = pneg %p499
        $region142: #{transformer_forward.1} parent=95 // pred_check_branch
          %892 = sbr.rel (%p890) target = $region144
        $region143: #{transformer_forward.1} parent=95 // pred_region
          %893 = dma.done [#allocation22], 16
        $region144: #{transformer_forward.1} parent=95 // pred_fallthru
          _
        %p894 = scmp.lt.s32.totalorder %s53, 1
        %s895 = scalar_select %p894, %s53, 1
        %s896 = smul.addr %s895, 8
        %s897 = scalar_lea.vmem %s0, %s896
        %p898 = pneg %p82
        %p899 = pneg %p79
        %s900 = sand.u32 %s95, 1
        %s901 = scalar_lea.sflag [#allocation5], %s900
        %s902 = sand.u32 %s95, 1
        %s903 = smul.addr %s902, 64
        %s904 = scalar_lea.vmem [#allocation4], %s903
        %p905 = pneg %p108
        %p906 = pneg %p105
        %p907 = scmp.lt.s32.totalorder %s54, 1
        %s908 = scalar_select %p907, %s54, 1
        %s909 = smul.addr %s908, 2
        %s910 = scalar_lea.vmem %s2, %s909
        %p911 = pneg %p134
        %p912 = pneg %p131
        %p913 = scmp.lt.s32.totalorder %s54, 1
        %s914 = scalar_select %p913, %s54, 1
        %s915 = smul.addr %s914, 8
        %s916 = smul.addr %s915, 4
        %s917 = scalar_lea.vmem %s3, %s916
        %p918 = pneg %p160
        %p919 = pneg %p157
        %p920 = scmp.lt.s32.totalorder %s54, 1
        %s921 = scalar_select %p920, %s54, 1
        %s922 = scalar_lea.vmem %s4, %s921
        %p923 = pneg %p186
        %p924 = pneg %p183
        %s925 = sand.u32 %s49, 1
        %s926 = scalar_lea.sflag [#allocation7], %s925
        %s927 = sand.u32 %s199, 1
        %s928 = smul.addr %s927, 32
        %s929 = scalar_lea.vmem [#allocation6], %s928
        %p930 = pneg %p212
        %p931 = pneg %p209
        %s932 = sand.u32 %s49, 1
        %s933 = scalar_lea.sflag [#allocation7], %s932
        %s934 = sand.u32 %s225, 1
        %s935 = scalar_lea.vmem [#allocation8], %s934
        %p936 = pneg %p238
        %p937 = pneg %p235
        %s938 = sand.u32 %s49, 1
        %s939 = scalar_lea.sflag [#allocation10], %s938
        %s940 = sand.u32 %s251, 1
        %s941 = smul.addr %s940, 32
        %s942 = scalar_lea.vmem [#allocation9], %s941
        %p943 = pneg %p264
        %p944 = pneg %p261
        %s945 = sand.u32 %s49, 1
        %s946 = scalar_lea.sflag [#allocation10], %s945
        %s947 = sand.u32 %s277, 1
        %s948 = scalar_lea.vmem [#allocation11], %s947
        %p949 = pneg %p290
        %p950 = pneg %p287
        %s951 = sand.u32 %s49, 1
        %s952 = scalar_lea.sflag [#allocation13], %s951
        %s953 = sand.u32 %s303, 1
        %s954 = scalar_lea.vmem [#allocation12], %s953
        %p955 = pneg %p316
        %p956 = pneg %p313
        %s957 = sand.u32 %s49, 1
        %s958 = scalar_lea.sflag [#allocation13], %s957
        %s959 = sand.u32 %s329, 1
        %s960 = scalar_lea.vmem [#allocation14], %s959
        %p961 = pneg %p342
        %p962 = pneg %p339
        %s963 = sand.u32 %s49, 1
        %s964 = scalar_lea.sflag [#allocation16], %s963
        %s965 = sand.u32 %s355, 1
        %s966 = scalar_lea.vmem [#allocation15], %s965
        %p967 = pneg %p368
        %p968 = pneg %p365
        %s969 = sand.u32 %s49, 1
        %s970 = scalar_lea.sflag [#allocation16], %s969
        %s971 = sand.u32 %s381, 1
        %s972 = scalar_lea.vmem [#allocation17], %s971
        %p973 = pneg %p394
        %p974 = pneg %p391
        %p975 = pneg %p415
        %p976 = pneg %p412
        %p977 = pneg %p436
        %p978 = pneg %p433
        %p979 = pneg %p457
        %p980 = pneg %p454
        %p981 = pneg %p478
        %p982 = pneg %p475
        %p983 = pneg %p499
        %p984 = pneg %p496
        %p985 = pneg %p520
        %p986 = pneg %p517
        %p987 = pneg %p546
        %p988 = pneg %p543
        %p989 = scmp.lt.s32.totalorder %s53, 1
        %s990 = scalar_select %p989, %s53, 1
        %s991 = smul.addr %s990, 8
        %s992 = scalar_lea.vmem %s19, %s991
        %p993 = scmp.lt.s32.totalorder %s53, 1
        %s994 = scalar_select %p993, %s53, 1
        %s995 = smul.addr %s994, 8
        %s996 = scalar_lea.vmem %s0, %s995
        %p997 = scmp.lt.s32.totalorder %s54, 1
        %s998 = scalar_select %p997, %s54, 1
        %s999 = smul.addr %s998, 2
        %s1000 = scalar_lea.vmem %s2, %s999
        %p1001 = scmp.lt.s32.totalorder %s54, 1
        %s1002 = scalar_select %p1001, %s54, 1
        %s1003 = smul.addr %s1002, 8
        %s1004 = smul.addr %s1003, 4
        %s1005 = scalar_lea.vmem %s3, %s1004
        %p1006 = scmp.lt.s32.totalorder %s54, 1
        %s1007 = scalar_select %p1006, %s54, 1
        %s1008 = scalar_lea.vmem %s4, %s1007
        %p1009 = scmp.lt.s32.totalorder %s53, 1
        %s1010 = scalar_select %p1009, %s53, 1
        %s1011 = smul.addr %s1010, 8
        %s1012 = scalar_lea.vmem %s19, %s1011
        %p1014 = scmp.eq.s32.totalorder %s54, 0
        // Predicated region
        $region145: #{transformer_forward.1} parent=95 // pred_check
          %p1015 = pneg %p1014
        $region146: #{transformer_forward.1} parent=95 // pred_check_branch
          %1017 = sbr.rel (%p1015) target = $region148
        $region147: #{transformer_forward.1} parent=95 // pred_region
          %v1018 = vld [vmem:[%s996] sm:$0xff]
          %vm1019 = vcmask 523264
          %1020 = vst.msk [vmem:[#allocation2] sm:$0xff] %vm1019, %v1018
        $region148: #{transformer_forward.1} parent=95 // pred_fallthru
          _
        %v1021 = vld [vmem:[#allocation2] sm:$0xff]
        %v1022 = vpack.c.bf16 %v1021, %v1021
        %v1023 = vld [vmem:[%s811] sm:$0xff]
        %v1024 = vld [vmem:[%s811 + $0x8] sm:$0xff]
        %v1025 = vld [vmem:[%s811 + $0x10] sm:$0xff]
        %v1026 = vld [vmem:[%s811 + $0x18] sm:$0xff]
        %v1027 = vld [vmem:[%s811 + $0x20] sm:$0xff]
        %v1028 = vld [vmem:[%s811 + $0x28] sm:$0xff]
        %v1029 = vld [vmem:[%s811 + $0x30] sm:$0xff]
        %v1030 = vld [vmem:[%s811 + $0x38] sm:$0xff]
        %v1031 = vld [vmem:[%s1000] sm:$0x3]
        %v1033 = vlaneseq
        %v1034 = vshrl.u32 %v1033, 7
        %v1035 = vsub.s32 0, %v1034
        %v1036 = vrot.slane %v1031, %v1035
        %v1037 = vlaneseq
        %v1038 = vshrl.u32 %v1037, 7
        %v1039 = vsub.s32 1, %v1038
        %v1040 = vrot.slane %v1031, %v1039
        %v1051 = vunpack.c.l.b16 %v1023
        %v1052 = vunpack.c.h.b16 %v1023
        %v1053 = vunpack.c.l.b16 %v1024
        %v1054 = vunpack.c.h.b16 %v1024
        %v1055 = vunpack.c.l.b16 %v1025
        %v1056 = vunpack.c.h.b16 %v1025
        %v1057 = vunpack.c.l.b16 %v1026
        %v1058 = vunpack.c.h.b16 %v1026
        %v1059 = vunpack.c.l.b16 %v1027
        %v1060 = vunpack.c.h.b16 %v1027
        %v1061 = vunpack.c.l.b16 %v1028
        %v1062 = vunpack.c.h.b16 %v1028
        %v1063 = vunpack.c.l.b16 %v1029
        %v1064 = vunpack.c.h.b16 %v1029
        %v1065 = vunpack.c.l.b16 %v1030
        %v1066 = vunpack.c.h.b16 %v1030
        %v1067 = vpack.c.b16 %v1053, %v1051
        %v1068 = vpack.c.b16 %v1054, %v1052
        %v1069 = vpack.c.b16 %v1057, %v1055
        %v1070 = vpack.c.b16 %v1058, %v1056
        %v1071 = vpack.c.b16 %v1061, %v1059
        %v1072 = vpack.c.b16 %v1062, %v1060
        %v1073 = vpack.c.b16 %v1065, %v1063
        %v1074 = vpack.c.b16 %v1066, %v1064
        %vm1083 = vcmask 523264
        %v1085 = vsel %vm1083, %v1022, 0
        %1087 = vmatprep.subr.bf16.mxu0 %v1068
        %1088 = vmatpush1.bf16.msra.mxu0 %v1067
        %1089 = vmatprep.subr.bf16.mxu0 %v1070
        %1090 = vmatpush1.bf16.msra.mxu0 %v1069
        %1091 = vmatprep.subr.bf16.mxu0 %v1072
        %1092 = vmatpush1.bf16.msra.mxu0 %v1071
        %1093 = vmatprep.subr.bf16.mxu0 %v1074
        %1094 = vmatpush1.bf16.msra.mxu0 %v1073
        %1095 = vmatprep.subr.bf16.mxu0 0
        %1096 = vmatpush1.bf16.msra.mxu0 0
        %1097 = vmatprep.subr.bf16.mxu0 0
        %1098 = vmatpush1.bf16.msra.mxu0 0
        %1099 = vmatprep.subr.bf16.mxu0 0
        %1100 = vmatpush1.bf16.msra.mxu0 0
        %1101 = vmatprep.subr.bf16.mxu0 0
        %1102 = vmatpush1.bf16.msra.mxu0 0
        %1103 = vmatprep.subr.bf16.mxu0 0
        %1104 = vmatpush1.bf16.msra.mxu0 0
        %1105 = vmatprep.subr.bf16.mxu0 0
        %1106 = vmatpush1.bf16.msra.mxu0 0
        %1107 = vmatprep.subr.bf16.mxu0 0
        %1108 = vmatpush1.bf16.msra.mxu0 0
        %1109 = vmatprep.subr.bf16.mxu0 0
        %1110 = vmatpush1.bf16.msra.mxu0 0
        %1111 = vmatprep.subr.bf16.mxu0 0
        %1112 = vmatpush1.bf16.msra.mxu0 0
        %1113 = vmatprep.subr.bf16.mxu0 0
        %1114 = vmatpush1.bf16.msra.mxu0 0
        %1115 = vmatprep.subr.bf16.mxu0 0
        %1116 = vmatpush1.bf16.msra.mxu0 0
        %1117 = vmatprep.subr.bf16.mxu0 0
        %1118 = vmatpush1.bf16.msra.mxu0 0
        %1119 = vmatprep.mubr.bf16.mxu0 0
        %1120 = vmatmul.mubr.bf16.gmra.mrb[0].mxu0 %v1085
        %v1121 = vpop.f32.mrb[0].mxu0
        %v1122 = vadd.f32 %v1036, %v1121
        %v1123 = vpop.f32.mrb[0].mxu0
        %v1124 = vadd.f32 %v1040, %v1123
        %v1125 = vpop.f32.mrb[0].mxu0
        %v1126 = vpop.f32.mrb[0].mxu0
        %1127 = vdwg.mxu0
        %1129 = vrot.lane.b32.xlu0 %v1122, 64
        %v1130 = vpop.permute.xlu0 %1129
        %vm1131 = vcmask 130048
        %v1132 = vsel %vm1131, %v1122, 0
        %v1134 = vsel %vm1131, %v1130, 0
        %1136 = vmatprep.subr.mxu0 0.0
        %1137 = vmatpush1.xpose.msra.mxu0 %v1134
        %1138 = vmatprep.subr.mxu0 0.0
        %1139 = vmatpush1.xpose.msra.mxu0 0.0
        %1140 = vmatprep.subr.mxu0 0.0
        %1141 = vmatpush1.xpose.msra.mxu0 0.0
        %1142 = vmatprep.subr.mxu0 0.0
        %1143 = vmatpush1.xpose.msra.mxu0 0.0
        %1144 = vmatprep.subr.mxu0 0.0
        %1145 = vmatpush1.xpose.msra.mxu0 0.0
        %1146 = vmatprep.subr.mxu0 0.0
        %1147 = vmatpush1.xpose.msra.mxu0 0.0
        %1148 = vmatprep.subr.mxu0 0.0
        %1149 = vmatpush1.xpose.msra.mxu0 0.0
        %1150 = vmatprep.subr.mxu0 0.0
        %1151 = vmatpush1.xpose.msra.mxu0 0.0
        %1152 = vmatprep.subr.mxu0 0.0
        %1153 = vmatpush1.xpose.msra.mxu0 0.0
        %1154 = vmatprep.subr.mxu0 0.0
        %1155 = vmatpush1.xpose.msra.mxu0 0.0
        %1156 = vmatprep.subr.mxu0 0.0
        %1157 = vmatpush1.xpose.msra.mxu0 0.0
        %1158 = vmatprep.subr.mxu0 0.0
        %1159 = vmatpush1.xpose.msra.mxu0 0.0
        %1160 = vmatprep.subr.mxu0 0.0
        %1161 = vmatpush1.xpose.msra.mxu0 0.0
        %1162 = vmatprep.subr.mxu0 0.0
        %1163 = vmatpush1.xpose.msra.mxu0 0.0
        %1164 = vmatprep.subr.mxu0 0.0
        %1165 = vmatpush1.xpose.msra.mxu0 0.0
        %1166 = vmatprep.subr.mxu0 0.0
        %1167 = vmatpush1.xpose.msra.mxu0 0.0
        %1168 = vmatprep.subr.mxu0 0.0
        %1169 = vmatpush1.xpose.msra.mxu0 0.0
        %1170 = vmatprep.subr.mxu0 0.0
        %1171 = vmatpush1.xpose.msra.mxu0 0.0
        %1172 = vmatprep.subr.mxu0 0.0
        %1173 = vmatpush1.xpose.msra.mxu0 0.0
        %1174 = vmatprep.subr.mxu0 0.0
        %1175 = vmatpush1.xpose.msra.mxu0 0.0
        %1176 = vmatprep.subr.mxu0 0.0
        %1177 = vmatpush1.xpose.msra.mxu0 0.0
        %1178 = vmatprep.subr.mxu0 0.0
        %1179 = vmatpush1.xpose.msra.mxu0 0.0
        %1180 = vmatprep.subr.mxu0 0.0
        %1181 = vmatpush1.xpose.msra.mxu0 0.0
        %1182 = vmatprep.subr.mxu0 0.0
        %1183 = vmatpush1.xpose.msra.mxu0 0.0
        %1184 = vmatprep.subr.mxu0 0.0
        %1185 = vmatpush1.xpose.msra.mxu0 0.0
        %1186 = vmatprep.subr.mxu0 0.0
        %1187 = vmatpush1.xpose.msra.mxu0 0.0
        %1188 = vmatprep.subr.mxu0 0.0
        %1189 = vmatpush1.xpose.msra.mxu0 0.0
        %1190 = vmatprep.subr.mxu0 0.0
        %1191 = vmatpush1.xpose.msra.mxu0 0.0
        %1192 = vmatprep.subr.mxu0 0.0
        %1193 = vmatpush1.xpose.msra.mxu0 0.0
        %1194 = vmatprep.subr.mxu0 0.0
        %1195 = vmatpush1.xpose.msra.mxu0 0.0
        %1196 = vmatprep.subr.mxu0 0.0
        %1197 = vmatpush1.xpose.msra.mxu0 0.0
        %1198 = vmatprep.subr.mxu0 0.0
        %1199 = vmatpush1.xpose.msra.mxu0 0.0
        %1200 = vmatprep.mubr.f32.mxu0 0.0
        %1201 = vmatmul.mubr.f32.gmra.mrb[0].mxu0 %v1132
        %v1202 = vpop.f32.mrb[0].mxu0
        %v1203 = vadd.f32 0.0, %v1202
        %v1204 = vpop.f32.mrb[0].mxu0
        %1205 = vdwg.mxu0
        %v1206 = vmul.f32 %v1203, 0.25
        %vm1207 = vcmask 64512
        %v1208 = vsel %vm1207, %v1206, -inf
        %1209 = vmax.xlane.f32.xlu0 %v1208
        %v1210 = vpop.xlane.xlu0 %1209
        %v1211 = vsub.f32 %v1206, %v1210
        %v1212 = vmul.f32 %v1211, 1.442695
        %v1213 = vpow.pop %v1212
        %v1214 = vsel %vm1207, %v1213, 0.0
        %1215 = vadd.xlane.f32.xlu0 %v1214
        %v1216 = vpop.xlane.xlu0 %1215
        %v1217 = vrcp.pop %v1216
        %v1218 = vmul.f32 %v1213, %v1217
        %v1220 = vsel %vm1207, %v1218, 0
        %1222 = vmatprep.subr.mxu0 0.0
        %1223 = vmatpush1.msra.mxu0 %v1124
        %1224 = vmatprep.subr.mxu0 0.0
        %1225 = vmatpush1.msra.mxu0 0.0
        %1226 = vmatprep.subr.mxu0 0.0
        %1227 = vmatpush1.msra.mxu0 0.0
        %1228 = vmatprep.subr.mxu0 0.0
        %1229 = vmatpush1.msra.mxu0 0.0
        %1230 = vmatprep.subr.mxu0 0.0
        %1231 = vmatpush1.msra.mxu0 0.0
        %1232 = vmatprep.subr.mxu0 0.0
        %1233 = vmatpush1.msra.mxu0 0.0
        %1234 = vmatprep.subr.mxu0 0.0
        %1235 = vmatpush1.msra.mxu0 0.0
        %1236 = vmatprep.subr.mxu0 0.0
        %1237 = vmatpush1.msra.mxu0 0.0
        %1238 = vmatprep.subr.mxu0 0.0
        %1239 = vmatpush1.msra.mxu0 0.0
        %1240 = vmatprep.subr.mxu0 0.0
        %1241 = vmatpush1.msra.mxu0 0.0
        %1242 = vmatprep.subr.mxu0 0.0
        %1243 = vmatpush1.msra.mxu0 0.0
        %1244 = vmatprep.subr.mxu0 0.0
        %1245 = vmatpush1.msra.mxu0 0.0
        %1246 = vmatprep.subr.mxu0 0.0
        %1247 = vmatpush1.msra.mxu0 0.0
        %1248 = vmatprep.subr.mxu0 0.0
        %1249 = vmatpush1.msra.mxu0 0.0
        %1250 = vmatprep.subr.mxu0 0.0
        %1251 = vmatpush1.msra.mxu0 0.0
        %1252 = vmatprep.subr.mxu0 0.0
        %1253 = vmatpush1.msra.mxu0 0.0
        %1254 = vmatprep.subr.mxu0 0.0
        %1255 = vmatpush1.msra.mxu0 0.0
        %1256 = vmatprep.subr.mxu0 0.0
        %1257 = vmatpush1.msra.mxu0 0.0
        %1258 = vmatprep.subr.mxu0 0.0
        %1259 = vmatpush1.msra.mxu0 0.0
        %1260 = vmatprep.subr.mxu0 0.0
        %1261 = vmatpush1.msra.mxu0 0.0
        %1262 = vmatprep.subr.mxu0 0.0
        %1263 = vmatpush1.msra.mxu0 0.0
        %1264 = vmatprep.subr.mxu0 0.0
        %1265 = vmatpush1.msra.mxu0 0.0
        %1266 = vmatprep.subr.mxu0 0.0
        %1267 = vmatpush1.msra.mxu0 0.0
        %1268 = vmatprep.subr.mxu0 0.0
        %1269 = vmatpush1.msra.mxu0 0.0
        %1270 = vmatprep.subr.mxu0 0.0
        %1271 = vmatpush1.msra.mxu0 0.0
        %1272 = vmatprep.subr.mxu0 0.0
        %1273 = vmatpush1.msra.mxu0 0.0
        %1274 = vmatprep.subr.mxu0 0.0
        %1275 = vmatpush1.msra.mxu0 0.0
        %1276 = vmatprep.subr.mxu0 0.0
        %1277 = vmatpush1.msra.mxu0 0.0
        %1278 = vmatprep.subr.mxu0 0.0
        %1279 = vmatpush1.msra.mxu0 0.0
        %1280 = vmatprep.subr.mxu0 0.0
        %1281 = vmatpush1.msra.mxu0 0.0
        %1282 = vmatprep.subr.mxu0 0.0
        %1283 = vmatpush1.msra.mxu0 0.0
        %1284 = vmatprep.subr.mxu0 0.0
        %1285 = vmatpush1.msra.mxu0 0.0
        %1286 = vmatprep.mubr.f32.mxu0 0.0
        %1287 = vmatmul.mubr.f32.gmra.mrb[0].mxu0 %v1220
        %v1288 = vpop.f32.mrb[0].mxu0
        %v1289 = vadd.f32 0.0, %v1288
        %v1290 = vpop.f32.mrb[0].mxu0
        %1291 = vdwg.mxu0
        %1292 = vrot.lane.b32.xlu0 %v1122, 112
        %v1293 = vpop.permute.xlu0 %1292
        %1294 = vrot.lane.b32.xlu0 %v1122, 48
        %v1295 = vpop.permute.xlu0 %1294
        %v1296 = vsel %vm1131, %v1293, 0
        %v1298 = vsel %vm1131, %v1295, 0
        %1300 = vmatprep.subr.mxu0 0.0
        %1301 = vmatpush1.xpose.msra.mxu0 %v1298
        %1302 = vmatprep.subr.mxu0 0.0
        %1303 = vmatpush1.xpose.msra.mxu0 0.0
        %1304 = vmatprep.subr.mxu0 0.0
        %1305 = vmatpush1.xpose.msra.mxu0 0.0
        %1306 = vmatprep.subr.mxu0 0.0
        %1307 = vmatpush1.xpose.msra.mxu0 0.0
        %1308 = vmatprep.subr.mxu0 0.0
        %1309 = vmatpush1.xpose.msra.mxu0 0.0
        %1310 = vmatprep.subr.mxu0 0.0
        %1311 = vmatpush1.xpose.msra.mxu0 0.0
        %1312 = vmatprep.subr.mxu0 0.0
        %1313 = vmatpush1.xpose.msra.mxu0 0.0
        %1314 = vmatprep.subr.mxu0 0.0
        %1315 = vmatpush1.xpose.msra.mxu0 0.0
        %1316 = vmatprep.subr.mxu0 0.0
        %1317 = vmatpush1.xpose.msra.mxu0 0.0
        %1318 = vmatprep.subr.mxu0 0.0
        %1319 = vmatpush1.xpose.msra.mxu0 0.0
        %1320 = vmatprep.subr.mxu0 0.0
        %1321 = vmatpush1.xpose.msra.mxu0 0.0
        %1322 = vmatprep.subr.mxu0 0.0
        %1323 = vmatpush1.xpose.msra.mxu0 0.0
        %1324 = vmatprep.subr.mxu0 0.0
        %1325 = vmatpush1.xpose.msra.mxu0 0.0
        %1326 = vmatprep.subr.mxu0 0.0
        %1327 = vmatpush1.xpose.msra.mxu0 0.0
        %1328 = vmatprep.subr.mxu0 0.0
        %1329 = vmatpush1.xpose.msra.mxu0 0.0
        %1330 = vmatprep.subr.mxu0 0.0
        %1331 = vmatpush1.xpose.msra.mxu0 0.0
        %1332 = vmatprep.subr.mxu0 0.0
        %1333 = vmatpush1.xpose.msra.mxu0 0.0
        %1334 = vmatprep.subr.mxu0 0.0
        %1335 = vmatpush1.xpose.msra.mxu0 0.0
        %1336 = vmatprep.subr.mxu0 0.0
        %1337 = vmatpush1.xpose.msra.mxu0 0.0
        %1338 = vmatprep.subr.mxu0 0.0
        %1339 = vmatpush1.xpose.msra.mxu0 0.0
        %1340 = vmatprep.subr.mxu0 0.0
        %1341 = vmatpush1.xpose.msra.mxu0 0.0
        %1342 = vmatprep.subr.mxu0 0.0
        %1343 = vmatpush1.xpose.msra.mxu0 0.0
        %1344 = vmatprep.subr.mxu0 0.0
        %1345 = vmatpush1.xpose.msra.mxu0 0.0
        %1346 = vmatprep.subr.mxu0 0.0
        %1347 = vmatpush1.xpose.msra.mxu0 0.0
        %1348 = vmatprep.subr.mxu0 0.0
        %1349 = vmatpush1.xpose.msra.mxu0 0.0
        %1350 = vmatprep.subr.mxu0 0.0
        %1351 = vmatpush1.xpose.msra.mxu0 0.0
        %1352 = vmatprep.subr.mxu0 0.0
        %1353 = vmatpush1.xpose.msra.mxu0 0.0
        %1354 = vmatprep.subr.mxu0 0.0
        %1355 = vmatpush1.xpose.msra.mxu0 0.0
        %1356 = vmatprep.subr.mxu0 0.0
        %1357 = vmatpush1.xpose.msra.mxu0 0.0
        %1358 = vmatprep.subr.mxu0 0.0
        %1359 = vmatpush1.xpose.msra.mxu0 0.0
        %1360 = vmatprep.subr.mxu0 0.0
        %1361 = vmatpush1.xpose.msra.mxu0 0.0
        %1362 = vmatprep.subr.mxu0 0.0
        %1363 = vmatpush1.xpose.msra.mxu0 0.0
        %1364 = vmatprep.mubr.f32.mxu0 0.0
        %1365 = vmatmul.mubr.f32.gmra.mrb[0].mxu0 %v1296
        %v1366 = vpop.f32.mrb[0].mxu0
        %v1367 = vadd.f32 0.0, %v1366
        %v1368 = vpop.f32.mrb[0].mxu0
        %1369 = vdwg.mxu0
        %v1370 = vmul.f32 %v1367, 0.25
        %v1371 = vsel %vm1207, %v1370, -inf
        %1372 = vmax.xlane.f32.xlu0 %v1371
        %v1373 = vpop.xlane.xlu0 %1372
        %v1374 = vsub.f32 %v1370, %v1373
        %v1375 = vmul.f32 %v1374, 1.442695
        %v1376 = vpow.pop %v1375
        %v1377 = vsel %vm1207, %v1376, 0.0
        %1378 = vadd.xlane.f32.xlu0 %v1377
        %v1379 = vpop.xlane.xlu0 %1378
        %v1380 = vrcp.pop %v1379
        %v1381 = vmul.f32 %v1376, %v1380
        %1383 = vrot.lane.b32.xlu0 %v1124, 112
        %v1384 = vpop.permute.xlu0 %1383
        %v1387 = vsel %vm1207, %v1381, 0
        %1389 = vmatprep.subr.mxu0 0.0
        %1390 = vmatpush1.msra.mxu0 %v1384
        %1391 = vmatprep.subr.mxu0 0.0
        %1392 = vmatpush1.msra.mxu0 0.0
        %1393 = vmatprep.subr.mxu0 0.0
        %1394 = vmatpush1.msra.mxu0 0.0
        %1395 = vmatprep.subr.mxu0 0.0
        %1396 = vmatpush1.msra.mxu0 0.0
        %1397 = vmatprep.subr.mxu0 0.0
        %1398 = vmatpush1.msra.mxu0 0.0
        %1399 = vmatprep.subr.mxu0 0.0
        %1400 = vmatpush1.msra.mxu0 0.0
        %1401 = vmatprep.subr.mxu0 0.0
        %1402 = vmatpush1.msra.mxu0 0.0
        %1403 = vmatprep.subr.mxu0 0.0
        %1404 = vmatpush1.msra.mxu0 0.0
        %1405 = vmatprep.subr.mxu0 0.0
        %1406 = vmatpush1.msra.mxu0 0.0
        %1407 = vmatprep.subr.mxu0 0.0
        %1408 = vmatpush1.msra.mxu0 0.0
        %1409 = vmatprep.subr.mxu0 0.0
        %1410 = vmatpush1.msra.mxu0 0.0
        %1411 = vmatprep.subr.mxu0 0.0
        %1412 = vmatpush1.msra.mxu0 0.0
        %1413 = vmatprep.subr.mxu0 0.0
        %1414 = vmatpush1.msra.mxu0 0.0
        %1415 = vmatprep.subr.mxu0 0.0
        %1416 = vmatpush1.msra.mxu0 0.0
        %1417 = vmatprep.subr.mxu0 0.0
        %1418 = vmatpush1.msra.mxu0 0.0
        %1419 = vmatprep.subr.mxu0 0.0
        %1420 = vmatpush1.msra.mxu0 0.0
        %1421 = vmatprep.subr.mxu0 0.0
        %1422 = vmatpush1.msra.mxu0 0.0
        %1423 = vmatprep.subr.mxu0 0.0
        %1424 = vmatpush1.msra.mxu0 0.0
        %1425 = vmatprep.subr.mxu0 0.0
        %1426 = vmatpush1.msra.mxu0 0.0
        %1427 = vmatprep.subr.mxu0 0.0
        %1428 = vmatpush1.msra.mxu0 0.0
        %1429 = vmatprep.subr.mxu0 0.0
        %1430 = vmatpush1.msra.mxu0 0.0
        %1431 = vmatprep.subr.mxu0 0.0
        %1432 = vmatpush1.msra.mxu0 0.0
        %1433 = vmatprep.subr.mxu0 0.0
        %1434 = vmatpush1.msra.mxu0 0.0
        %1435 = vmatprep.subr.mxu0 0.0
        %1436 = vmatpush1.msra.mxu0 0.0
        %1437 = vmatprep.subr.mxu0 0.0
        %1438 = vmatpush1.msra.mxu0 0.0
        %1439 = vmatprep.subr.mxu0 0.0
        %1440 = vmatpush1.msra.mxu0 0.0
        %1441 = vmatprep.subr.mxu0 0.0
        %1442 = vmatpush1.msra.mxu0 0.0
        %1443 = vmatprep.subr.mxu0 0.0
        %1444 = vmatpush1.msra.mxu0 0.0
        %1445 = vmatprep.subr.mxu0 0.0
        %1446 = vmatpush1.msra.mxu0 0.0
        %1447 = vmatprep.subr.mxu0 0.0
        %1448 = vmatpush1.msra.mxu0 0.0
        %1449 = vmatprep.subr.mxu0 0.0
        %1450 = vmatpush1.msra.mxu0 0.0
        %1451 = vmatprep.subr.mxu0 0.0
        %1452 = vmatpush1.msra.mxu0 0.0
        %1453 = vmatprep.mubr.f32.mxu0 0.0
        %1454 = vmatmul.mubr.f32.gmra.mrb[0].mxu0 %v1387
        %v1455 = vpop.f32.mrb[0].mxu0
        %v1456 = vadd.f32 0.0, %v1455
        %v1457 = vpop.f32.mrb[0].mxu0
        %1458 = vdwg.mxu0
        %1459 = vrot.lane.b32.xlu0 %v1122, 96
        %v1460 = vpop.permute.xlu0 %1459
        %1461 = vrot.lane.b32.xlu0 %v1122, 32
        %v1462 = vpop.permute.xlu0 %1461
        %v1463 = vsel %vm1131, %v1460, 0
        %v1465 = vsel %vm1131, %v1462, 0
        %1467 = vmatprep.subr.mxu0 0.0
        %1468 = vmatpush1.xpose.msra.mxu0 %v1465
        %1469 = vmatprep.subr.mxu0 0.0
        %1470 = vmatpush1.xpose.msra.mxu0 0.0
        %1471 = vmatprep.subr.mxu0 0.0
        %1472 = vmatpush1.xpose.msra.mxu0 0.0
        %1473 = vmatprep.subr.mxu0 0.0
        %1474 = vmatpush1.xpose.msra.mxu0 0.0
        %1475 = vmatprep.subr.mxu0 0.0
        %1476 = vmatpush1.xpose.msra.mxu0 0.0
        %1477 = vmatprep.subr.mxu0 0.0
        %1478 = vmatpush1.xpose.msra.mxu0 0.0
        %1479 = vmatprep.subr.mxu0 0.0
        %1480 = vmatpush1.xpose.msra.mxu0 0.0
        %1481 = vmatprep.subr.mxu0 0.0
        %1482 = vmatpush1.xpose.msra.mxu0 0.0
        %1483 = vmatprep.subr.mxu0 0.0
        %1484 = vmatpush1.xpose.msra.mxu0 0.0
        %1485 = vmatprep.subr.mxu0 0.0
        %1486 = vmatpush1.xpose.msra.mxu0 0.0
        %1487 = vmatprep.subr.mxu0 0.0
        %1488 = vmatpush1.xpose.msra.mxu0 0.0
        %1489 = vmatprep.subr.mxu0 0.0
        %1490 = vmatpush1.xpose.msra.mxu0 0.0
        %1491 = vmatprep.subr.mxu0 0.0
        %1492 = vmatpush1.xpose.msra.mxu0 0.0
        %1493 = vmatprep.subr.mxu0 0.0
        %1494 = vmatpush1.xpose.msra.mxu0 0.0
        %1495 = vmatprep.subr.mxu0 0.0
        %1496 = vmatpush1.xpose.msra.mxu0 0.0
        %1497 = vmatprep.subr.mxu0 0.0
        %1498 = vmatpush1.xpose.msra.mxu0 0.0
        %1499 = vmatprep.subr.mxu0 0.0
        %1500 = vmatpush1.xpose.msra.mxu0 0.0
        %1501 = vmatprep.subr.mxu0 0.0
        %1502 = vmatpush1.xpose.msra.mxu0 0.0
        %1503 = vmatprep.subr.mxu0 0.0
        %1504 = vmatpush1.xpose.msra.mxu0 0.0
        %1505 = vmatprep.subr.mxu0 0.0
        %1506 = vmatpush1.xpose.msra.mxu0 0.0
        %1507 = vmatprep.subr.mxu0 0.0
        %1508 = vmatpush1.xpose.msra.mxu0 0.0
        %1509 = vmatprep.subr.mxu0 0.0
        %1510 = vmatpush1.xpose.msra.mxu0 0.0
        %1511 = vmatprep.subr.mxu0 0.0
        %1512 = vmatpush1.xpose.msra.mxu0 0.0
        %1513 = vmatprep.subr.mxu0 0.0
        %1514 = vmatpush1.xpose.msra.mxu0 0.0
        %1515 = vmatprep.subr.mxu0 0.0
        %1516 = vmatpush1.xpose.msra.mxu0 0.0
        %1517 = vmatprep.subr.mxu0 0.0
        %1518 = vmatpush1.xpose.msra.mxu0 0.0
        %1519 = vmatprep.subr.mxu0 0.0
        %1520 = vmatpush1.xpose.msra.mxu0 0.0
        %1521 = vmatprep.subr.mxu0 0.0
        %1522 = vmatpush1.xpose.msra.mxu0 0.0
        %1523 = vmatprep.subr.mxu0 0.0
        %1524 = vmatpush1.xpose.msra.mxu0 0.0
        %1525 = vmatprep.subr.mxu0 0.0
        %1526 = vmatpush1.xpose.msra.mxu0 0.0
        %1527 = vmatprep.subr.mxu0 0.0
        %1528 = vmatpush1.xpose.msra.mxu0 0.0
        %1529 = vmatprep.subr.mxu0 0.0
        %1530 = vmatpush1.xpose.msra.mxu0 0.0
        %1531 = vmatprep.mubr.f32.mxu0 0.0
        %1532 = vmatmul.mubr.f32.gmra.mrb[0].mxu0 %v1463
        %v1533 = vpop.f32.mrb[0].mxu0
        %v1534 = vadd.f32 0.0, %v1533
        %v1535 = vpop.f32.mrb[0].mxu0
        %1536 = vdwg.mxu0
        %v1537 = vmul.f32 %v1534, 0.25
        %v1538 = vsel %vm1207, %v1537, -inf
        %1539 = vmax.xlane.f32.xlu0 %v1538
        %v1540 = vpop.xlane.xlu0 %1539
        %v1541 = vsub.f32 %v1537, %v1540
        %v1542 = vmul.f32 %v1541, 1.442695
        %v1543 = vpow.pop %v1542
        %v1544 = vsel %vm1207, %v1543, 0.0
        %1545 = vadd.xlane.f32.xlu0 %v1544
        %v1546 = vpop.xlane.xlu0 %1545
        %v1547 = vrcp.pop %v1546
        %v1548 = vmul.f32 %v1543, %v1547
        %1549 = vrot.lane.b32.xlu0 %v1124, 96
        %v1550 = vpop.permute.xlu0 %1549
        %v1553 = vsel %vm1207, %v1548, 0
        %1555 = vmatprep.subr.mxu0 0.0
        %1556 = vmatpush1.msra.mxu0 %v1550
        %1557 = vmatprep.subr.mxu0 0.0
        %1558 = vmatpush1.msra.mxu0 0.0
        %1559 = vmatprep.subr.mxu0 0.0
        %1560 = vmatpush1.msra.mxu0 0.0
        %1561 = vmatprep.subr.mxu0 0.0
        %1562 = vmatpush1.msra.mxu0 0.0
        %1563 = vmatprep.subr.mxu0 0.0
        %1564 = vmatpush1.msra.mxu0 0.0
        %1565 = vmatprep.subr.mxu0 0.0
        %1566 = vmatpush1.msra.mxu0 0.0
        %1567 = vmatprep.subr.mxu0 0.0
        %1568 = vmatpush1.msra.mxu0 0.0
        %1569 = vmatprep.subr.mxu0 0.0
        %1570 = vmatpush1.msra.mxu0 0.0
        %1571 = vmatprep.subr.mxu0 0.0
        %1572 = vmatpush1.msra.mxu0 0.0
        %1573 = vmatprep.subr.mxu0 0.0
        %1574 = vmatpush1.msra.mxu0 0.0
        %1575 = vmatprep.subr.mxu0 0.0
        %1576 = vmatpush1.msra.mxu0 0.0
        %1577 = vmatprep.subr.mxu0 0.0
        %1578 = vmatpush1.msra.mxu0 0.0
        %1579 = vmatprep.subr.mxu0 0.0
        %1580 = vmatpush1.msra.mxu0 0.0
        %1581 = vmatprep.subr.mxu0 0.0
        %1582 = vmatpush1.msra.mxu0 0.0
        %1583 = vmatprep.subr.mxu0 0.0
        %1584 = vmatpush1.msra.mxu0 0.0
        %1585 = vmatprep.subr.mxu0 0.0
        %1586 = vmatpush1.msra.mxu0 0.0
        %1587 = vmatprep.subr.mxu0 0.0
        %1588 = vmatpush1.msra.mxu0 0.0
        %1589 = vmatprep.subr.mxu0 0.0
        %1590 = vmatpush1.msra.mxu0 0.0
        %1591 = vmatprep.subr.mxu0 0.0
        %1592 = vmatpush1.msra.mxu0 0.0
        %1593 = vmatprep.subr.mxu0 0.0
        %1594 = vmatpush1.msra.mxu0 0.0
        %1595 = vmatprep.subr.mxu0 0.0
        %1596 = vmatpush1.msra.mxu0 0.0
        %1597 = vmatprep.subr.mxu0 0.0
        %1598 = vmatpush1.msra.mxu0 0.0
        %1599 = vmatprep.subr.mxu0 0.0
        %1600 = vmatpush1.msra.mxu0 0.0
        %1601 = vmatprep.subr.mxu0 0.0
        %1602 = vmatpush1.msra.mxu0 0.0
        %1603 = vmatprep.subr.mxu0 0.0
        %1604 = vmatpush1.msra.mxu0 0.0
        %1605 = vmatprep.subr.mxu0 0.0
        %1606 = vmatpush1.msra.mxu0 0.0
        %1607 = vmatprep.subr.mxu0 0.0
        %1608 = vmatpush1.msra.mxu0 0.0
        %1609 = vmatprep.subr.mxu0 0.0
        %1610 = vmatpush1.msra.mxu0 0.0
        %1611 = vmatprep.subr.mxu0 0.0
        %1612 = vmatpush1.msra.mxu0 0.0
        %1613 = vmatprep.subr.mxu0 0.0
        %1614 = vmatpush1.msra.mxu0 0.0
        %1615 = vmatprep.subr.mxu0 0.0
        %1616 = vmatpush1.msra.mxu0 0.0
        %1617 = vmatprep.subr.mxu0 0.0
        %1618 = vmatpush1.msra.mxu0 0.0
        %1619 = vmatprep.mubr.f32.mxu0 0.0
        %1620 = vmatmul.mubr.f32.gmra.mrb[0].mxu0 %v1553
        %v1621 = vpop.f32.mrb[0].mxu0
        %v1622 = vadd.f32 0.0, %v1621
        %v1623 = vpop.f32.mrb[0].mxu0
        %1624 = vdwg.mxu0
        %1625 = vrot.lane.b32.xlu0 %v1122, 80
        %v1626 = vpop.permute.xlu0 %1625
        %1627 = vrot.lane.b32.xlu0 %v1122, 16
        %v1628 = vpop.permute.xlu0 %1627
        %v1629 = vsel %vm1131, %v1626, 0
        %v1631 = vsel %vm1131, %v1628, 0
        %1633 = vmatprep.subr.mxu0 0.0
        %1634 = vmatpush1.xpose.msra.mxu0 %v1631
        %1635 = vmatprep.subr.mxu0 0.0
        %1636 = vmatpush1.xpose.msra.mxu0 0.0
        %1637 = vmatprep.subr.mxu0 0.0
        %1638 = vmatpush1.xpose.msra.mxu0 0.0
        %1639 = vmatprep.subr.mxu0 0.0
        %1640 = vmatpush1.xpose.msra.mxu0 0.0
        %1641 = vmatprep.subr.mxu0 0.0
        %1642 = vmatpush1.xpose.msra.mxu0 0.0
        %1643 = vmatprep.subr.mxu0 0.0
        %1644 = vmatpush1.xpose.msra.mxu0 0.0
        %1645 = vmatprep.subr.mxu0 0.0
        %1646 = vmatpush1.xpose.msra.mxu0 0.0
        %1647 = vmatprep.subr.mxu0 0.0
        %1648 = vmatpush1.xpose.msra.mxu0 0.0
        %1649 = vmatprep.subr.mxu0 0.0
        %1650 = vmatpush1.xpose.msra.mxu0 0.0
        %1651 = vmatprep.subr.mxu0 0.0
        %1652 = vmatpush1.xpose.msra.mxu0 0.0
        %1653 = vmatprep.subr.mxu0 0.0
        %1654 = vmatpush1.xpose.msra.mxu0 0.0
        %1655 = vmatprep.subr.mxu0 0.0
        %1656 = vmatpush1.xpose.msra.mxu0 0.0
        %1657 = vmatprep.subr.mxu0 0.0
        %1658 = vmatpush1.xpose.msra.mxu0 0.0
        %1659 = vmatprep.subr.mxu0 0.0
        %1660 = vmatpush1.xpose.msra.mxu0 0.0
        %1661 = vmatprep.subr.mxu0 0.0
        %1662 = vmatpush1.xpose.msra.mxu0 0.0
        %1663 = vmatprep.subr.mxu0 0.0
        %1664 = vmatpush1.xpose.msra.mxu0 0.0
        %1665 = vmatprep.subr.mxu0 0.0
        %1666 = vmatpush1.xpose.msra.mxu0 0.0
        %1667 = vmatprep.subr.mxu0 0.0
        %1668 = vmatpush1.xpose.msra.mxu0 0.0
        %1669 = vmatprep.subr.mxu0 0.0
        %1670 = vmatpush1.xpose.msra.mxu0 0.0
        %1671 = vmatprep.subr.mxu0 0.0
        %1672 = vmatpush1.xpose.msra.mxu0 0.0
        %1673 = vmatprep.subr.mxu0 0.0
        %1674 = vmatpush1.xpose.msra.mxu0 0.0
        %1675 = vmatprep.subr.mxu0 0.0
        %1676 = vmatpush1.xpose.msra.mxu0 0.0
        %1677 = vmatprep.subr.mxu0 0.0
        %1678 = vmatpush1.xpose.msra.mxu0 0.0
        %1679 = vmatprep.subr.mxu0 0.0
        %1680 = vmatpush1.xpose.msra.mxu0 0.0
        %1681 = vmatprep.subr.mxu0 0.0
        %1682 = vmatpush1.xpose.msra.mxu0 0.0
        %1683 = vmatprep.subr.mxu0 0.0
        %1684 = vmatpush1.xpose.msra.mxu0 0.0
        %1685 = vmatprep.subr.mxu0 0.0
        %1686 = vmatpush1.xpose.msra.mxu0 0.0
        %1687 = vmatprep.subr.mxu0 0.0
        %1688 = vmatpush1.xpose.msra.mxu0 0.0
        %1689 = vmatprep.subr.mxu0 0.0
        %1690 = vmatpush1.xpose.msra.mxu0 0.0
        %1691 = vmatprep.subr.mxu0 0.0
        %1692 = vmatpush1.xpose.msra.mxu0 0.0
        %1693 = vmatprep.subr.mxu0 0.0
        %1694 = vmatpush1.xpose.msra.mxu0 0.0
        %1695 = vmatprep.subr.mxu0 0.0
        %1696 = vmatpush1.xpose.msra.mxu0 0.0
        %1697 = vmatprep.mubr.f32.mxu0 0.0
        %1698 = vmatmul.mubr.f32.gmra.mrb[0].mxu0 %v1629
        %v1699 = vpop.f32.mrb[0].mxu0
        %v1700 = vadd.f32 0.0, %v1699
        %v1701 = vpop.f32.mrb[0].mxu0
        %1702 = vdwg.mxu0
        %v1703 = vmul.f32 %v1700, 0.25
        %v1704 = vsel %vm1207, %v1703, -inf
        %1705 = vmax.xlane.f32.xlu0 %v1704
        %v1706 = vpop.xlane.xlu0 %1705
        %v1707 = vsub.f32 %v1703, %v1706
        %v1708 = vmul.f32 %v1707, 1.442695
        %v1709 = vpow.pop %v1708
        %v1710 = vsel %vm1207, %v1709, 0.0
        %1711 = vadd.xlane.f32.xlu0 %v1710
        %v1712 = vpop.xlane.xlu0 %1711
        %v1713 = vrcp.pop %v1712
        %v1714 = vmul.f32 %v1709, %v1713
        %1715 = vrot.lane.b32.xlu0 %v1124, 80
        %v1716 = vpop.permute.xlu0 %1715
        %v1719 = vsel %vm1207, %v1714, 0
        %1721 = vmatprep.subr.mxu0 0.0
        %1722 = vmatpush1.msra.mxu0 %v1716
        %1723 = vmatprep.subr.mxu0 0.0
        %1724 = vmatpush1.msra.mxu0 0.0
        %1725 = vmatprep.subr.mxu0 0.0
        %1726 = vmatpush1.msra.mxu0 0.0
        %1727 = vmatprep.subr.mxu0 0.0
        %1728 = vmatpush1.msra.mxu0 0.0
        %1729 = vmatprep.subr.mxu0 0.0
        %1730 = vmatpush1.msra.mxu0 0.0
        %1731 = vmatprep.subr.mxu0 0.0
        %1732 = vmatpush1.msra.mxu0 0.0
        %1733 = vmatprep.subr.mxu0 0.0
        %1734 = vmatpush1.msra.mxu0 0.0
        %1735 = vmatprep.subr.mxu0 0.0
        %1736 = vmatpush1.msra.mxu0 0.0
        %1737 = vmatprep.subr.mxu0 0.0
        %1738 = vmatpush1.msra.mxu0 0.0
        %1739 = vmatprep.subr.mxu0 0.0
        %1740 = vmatpush1.msra.mxu0 0.0
        %1741 = vmatprep.subr.mxu0 0.0
        %1742 = vmatpush1.msra.mxu0 0.0
        %1743 = vmatprep.subr.mxu0 0.0
        %1744 = vmatpush1.msra.mxu0 0.0
        %1745 = vmatprep.subr.mxu0 0.0
        %1746 = vmatpush1.msra.mxu0 0.0
        %1747 = vmatprep.subr.mxu0 0.0
        %1748 = vmatpush1.msra.mxu0 0.0
        %1749 = vmatprep.subr.mxu0 0.0
        %1750 = vmatpush1.msra.mxu0 0.0
        %1751 = vmatprep.subr.mxu0 0.0
        %1752 = vmatpush1.msra.mxu0 0.0
        %1753 = vmatprep.subr.mxu0 0.0
        %1754 = vmatpush1.msra.mxu0 0.0
        %1755 = vmatprep.subr.mxu0 0.0
        %1756 = vmatpush1.msra.mxu0 0.0
        %1757 = vmatprep.subr.mxu0 0.0
        %1758 = vmatpush1.msra.mxu0 0.0
        %1759 = vmatprep.subr.mxu0 0.0
        %1760 = vmatpush1.msra.mxu0 0.0
        %1761 = vmatprep.subr.mxu0 0.0
        %1762 = vmatpush1.msra.mxu0 0.0
        %1763 = vmatprep.subr.mxu0 0.0
        %1764 = vmatpush1.msra.mxu0 0.0
        %1765 = vmatprep.subr.mxu0 0.0
        %1766 = vmatpush1.msra.mxu0 0.0
        %1767 = vmatprep.subr.mxu0 0.0
        %1768 = vmatpush1.msra.mxu0 0.0
        %1769 = vmatprep.subr.mxu0 0.0
        %1770 = vmatpush1.msra.mxu0 0.0
        %1771 = vmatprep.subr.mxu0 0.0
        %1772 = vmatpush1.msra.mxu0 0.0
        %1773 = vmatprep.subr.mxu0 0.0
        %1774 = vmatpush1.msra.mxu0 0.0
        %1775 = vmatprep.subr.mxu0 0.0
        %1776 = vmatpush1.msra.mxu0 0.0
        %1777 = vmatprep.subr.mxu0 0.0
        %1778 = vmatpush1.msra.mxu0 0.0
        %1779 = vmatprep.subr.mxu0 0.0
        %1780 = vmatpush1.msra.mxu0 0.0
        %1781 = vmatprep.subr.mxu0 0.0
        %1782 = vmatpush1.msra.mxu0 0.0
        %1783 = vmatprep.subr.mxu0 0.0
        %1784 = vmatpush1.msra.mxu0 0.0
        %1785 = vmatprep.mubr.f32.mxu0 0.0
        %1786 = vmatmul.mubr.f32.gmra.mrb[0].mxu0 %v1719
        %v1787 = vpop.f32.mrb[0].mxu0
        %v1788 = vadd.f32 0.0, %v1787
        %v1789 = vpop.f32.mrb[0].mxu0
        %1790 = vdwg.mxu0
        %1792 = vrot.lane.b32.xlu0 %v1456, 16
        %v1793 = vpop.permute.xlu0 %1792
        %1796 = vrot.lane.b32.xlu0 %v1622, 32
        %v1797 = vpop.permute.xlu0 %1796
        %1800 = vrot.lane.b32.xlu0 %v1788, 48
        %v1801 = vpop.permute.xlu0 %1800
        %v1803 = vsel %vm1131, %v1289, %v1793
        %vm1804 = vcmask 261120
        %v1805 = vsel %vm1804, %v1803, %v1797
        %vm1806 = vcmask 392192
        %v1807 = vsel %vm1806, %v1805, %v1801
        %v1808 = vpack.c.bf16 %v1807, %v1807
        %v1809 = vld [vmem:[%s1005] sm:$0xf]
        %v1810 = vld [vmem:[%s1005 + $0x4] sm:$0xf]
        %v1811 = vld [vmem:[%s1005 + $0x8] sm:$0xf]
        %v1812 = vld [vmem:[%s1005 + $0xc] sm:$0xf]
        %v1813 = vld [vmem:[%s1005 + $0x10] sm:$0xf]
        %v1814 = vld [vmem:[%s1005 + $0x14] sm:$0xf]
        %v1815 = vld [vmem:[%s1005 + $0x18] sm:$0xf]
        %v1816 = vld [vmem:[%s1005 + $0x1c] sm:$0xf]
        %v1817 = vld [vmem:[%s1008] sm:$0x1]
        %v1819 = vlaneseq
        %v1820 = vshrl.u32 %v1819, 7
        %v1821 = vsub.s32 0, %v1820
        %v1822 = vrot.slane %v1817, %v1821
        %v1832 = vunpack.c.l.b16 %v1809
        %v1833 = vunpack.c.l.b16 %v1810
        %v1834 = vunpack.c.l.b16 %v1811
        %v1835 = vunpack.c.l.b16 %v1812
        %v1836 = vunpack.c.l.b16 %v1813
        %v1837 = vunpack.c.l.b16 %v1814
        %v1838 = vunpack.c.l.b16 %v1815
        %v1839 = vunpack.c.l.b16 %v1816
        %v1840 = vpack.c.b16 %v1833, %v1832
        %v1841 = vpack.c.b16 %v1835, %v1834
        %v1842 = vpack.c.b16 %v1837, %v1836
        %v1843 = vpack.c.b16 %v1839, %v1838
        %v1849 = vsel %vm1083, %v1808, 0
        %1851 = vmatprep.subr.bf16.mxu0 0
        %1852 = vmatpush1.bf16.msra.mxu0 %v1840
        %1853 = vmatprep.subr.bf16.mxu0 0
        %1854 = vmatpush1.bf16.msra.mxu0 %v1841
        %1855 = vmatprep.subr.bf16.mxu0 0
        %1856 = vmatpush1.bf16.msra.mxu0 %v1842
        %1857 = vmatprep.subr.bf16.mxu0 0
        %1858 = vmatpush1.bf16.msra.mxu0 %v1843
        %1859 = vmatprep.subr.bf16.mxu0 0
        %1860 = vmatpush1.bf16.msra.mxu0 0
        %1861 = vmatprep.subr.bf16.mxu0 0
        %1862 = vmatpush1.bf16.msra.mxu0 0
        %1863 = vmatprep.subr.bf16.mxu0 0
        %1864 = vmatpush1.bf16.msra.mxu0 0
        %1865 = vmatprep.subr.bf16.mxu0 0
        %1866 = vmatpush1.bf16.msra.mxu0 0
        %1867 = vmatprep.subr.bf16.mxu0 0
        %1868 = vmatpush1.bf16.msra.mxu0 0
        %1869 = vmatprep.subr.bf16.mxu0 0
        %1870 = vmatpush1.bf16.msra.mxu0 0
        %1871 = vmatprep.subr.bf16.mxu0 0
        %1872 = vmatpush1.bf16.msra.mxu0 0
        %1873 = vmatprep.subr.bf16.mxu0 0
        %1874 = vmatpush1.bf16.msra.mxu0 0
        %1875 = vmatprep.subr.bf16.mxu0 0
        %1876 = vmatpush1.bf16.msra.mxu0 0
        %1877 = vmatprep.subr.bf16.mxu0 0
        %1878 = vmatpush1.bf16.msra.mxu0 0
        %1879 = vmatprep.subr.bf16.mxu0 0
        %1880 = vmatpush1.bf16.msra.mxu0 0
        %1881 = vmatprep.subr.bf16.mxu0 0
        %1882 = vmatpush1.bf16.msra.mxu0 0
        %1883 = vmatprep.mubr.bf16.mxu0 0
        %1884 = vmatmul.mubr.bf16.gmra.mrb[0].mxu0 %v1849
        %v1885 = vpop.f32.mrb[0].mxu0
        %v1886 = vadd.f32 %v1822, %v1885
        %v1887 = vpop.f32.mrb[0].mxu0
        %v1888 = vpop.f32.mrb[0].mxu0
        %v1889 = vpop.f32.mrb[0].mxu0
        %1890 = vdwg.mxu0
        %v1891 = vadd.f32 %v1021, %v1886
        %v1892 = vld [vmem:[%s853] sm:$0x1]
        %v1893 = vld [vmem:[%s861] sm:$0x1]
        %v1894 = vsel %vm1083, %v1891, 0.0
        %1895 = vadd.xlane.f32.xlu0 %v1894
        %v1896 = vpop.xlane.xlu0 %1895
        %v1897 = vrcp.pop 64.0
        %v1898 = vmul.f32 %v1896, %v1897
        %v1899 = vsub.f32 %v1891, %v1898
        %v1900 = vmul.f32 %v1899, %v1899
        %v1901 = vsel %vm1083, %v1900, 0.0
        %1902 = vadd.xlane.f32.xlu0 %v1901
        %v1903 = vpop.xlane.xlu0 %1902
        %v1904 = vmul.f32 %v1903, %v1897
        %v1905 = vadd.f32 %v1904, 1e-05
        %v1906 = vrsqrt.pop %v1905
        %v1907 = vmul.f32 %v1899, %v1906
        %v1909 = vlaneseq
        %v1910 = vshrl.u32 %v1909, 7
        %v1911 = vsub.s32 0, %v1910
        %v1912 = vrot.slane %v1892, %v1911
        %v1914 = vmul.f32 %v1907, %v1912
        %v1916 = vlaneseq
        %v1917 = vshrl.u32 %v1916, 7
        %v1918 = vsub.s32 0, %v1917
        %v1919 = vrot.slane %v1893, %v1918
        %v1921 = vadd.f32 %v1914, %v1919
        %v1922 = vpack.c.bf16 %v1921, %v1921
        %v1923 = vld [vmem:[%s820] sm:$0xf]
        %v1924 = vld [vmem:[%s820 + $0x4] sm:$0xf]
        %v1925 = vld [vmem:[%s820 + $0x8] sm:$0xf]
        %v1926 = vld [vmem:[%s820 + $0xc] sm:$0xf]
        %v1927 = vld [vmem:[%s820 + $0x10] sm:$0xf]
        %v1928 = vld [vmem:[%s820 + $0x14] sm:$0xf]
        %v1929 = vld [vmem:[%s820 + $0x18] sm:$0xf]
        %v1930 = vld [vmem:[%s820 + $0x1c] sm:$0xf]
        %v1931 = vld [vmem:[%s828] sm:$0x1]
        %v1933 = vlaneseq
        %v1934 = vshrl.u32 %v1933, 7
        %v1935 = vsub.s32 0, %v1934
        %v1936 = vrot.slane %v1931, %v1935
        %v1946 = vunpack.c.l.b16 %v1923
        %v1947 = vunpack.c.l.b16 %v1924
        %v1948 = vunpack.c.l.b16 %v1925
        %v1949 = vunpack.c.l.b16 %v1926
        %v1950 = vunpack.c.l.b16 %v1927
        %v1951 = vunpack.c.l.b16 %v1928
        %v1952 = vunpack.c.l.b16 %v1929
        %v1953 = vunpack.c.l.b16 %v1930
        %v1954 = vpack.c.b16 %v1947, %v1946
        %v1955 = vpack.c.b16 %v1949, %v1948
        %v1956 = vpack.c.b16 %v1951, %v1950
        %v1957 = vpack.c.b16 %v1953, %v1952
        %v1963 = vsel %vm1083, %v1922, 0
        %1965 = vmatprep.subr.bf16.mxu0 0
        %1966 = vmatpush1.bf16.msra.mxu0 %v1954
        %1967 = vmatprep.subr.bf16.mxu0 0
        %1968 = vmatpush1.bf16.msra.mxu0 %v1955
        %1969 = vmatprep.subr.bf16.mxu0 0
        %1970 = vmatpush1.bf16.msra.mxu0 %v1956
        %1971 = vmatprep.subr.bf16.mxu0 0
        %1972 = vmatpush1.bf16.msra.mxu0 %v1957
        %1973 = vmatprep.subr.bf16.mxu0 0
        %1974 = vmatpush1.bf16.msra.mxu0 0
        %1975 = vmatprep.subr.bf16.mxu0 0
        %1976 = vmatpush1.bf16.msra.mxu0 0
        %1977 = vmatprep.subr.bf16.mxu0 0
        %1978 = vmatpush1.bf16.msra.mxu0 0
        %1979 = vmatprep.subr.bf16.mxu0 0
        %1980 = vmatpush1.bf16.msra.mxu0 0
        %1981 = vmatprep.subr.bf16.mxu0 0
        %1982 = vmatpush1.bf16.msra.mxu0 0
        %1983 = vmatprep.subr.bf16.mxu0 0
        %1984 = vmatpush1.bf16.msra.mxu0 0
        %1985 = vmatprep.subr.bf16.mxu0 0
        %1986 = vmatpush1.bf16.msra.mxu0 0
        %1987 = vmatprep.subr.bf16.mxu0 0
        %1988 = vmatpush1.bf16.msra.mxu0 0
        %1989 = vmatprep.subr.bf16.mxu0 0
        %1990 = vmatpush1.bf16.msra.mxu0 0
        %1991 = vmatprep.subr.bf16.mxu0 0
        %1992 = vmatpush1.bf16.msra.mxu0 0
        %1993 = vmatprep.subr.bf16.mxu0 0
        %1994 = vmatpush1.bf16.msra.mxu0 0
        %1995 = vmatprep.subr.bf16.mxu0 0
        %1996 = vmatpush1.bf16.msra.mxu0 0
        %1997 = vmatprep.mubr.bf16.mxu0 0
        %1998 = vmatmul.mubr.bf16.gmra.mrb[0].mxu0 %v1963
        %v1999 = vpop.f32.mrb[0].mxu0
        %v2000 = vadd.f32 %v1936, %v1999
        %v2001 = vpop.f32.mrb[0].mxu0
        %v2002 = vpop.f32.mrb[0].mxu0
        %v2003 = vpop.f32.mrb[0].mxu0
        %2004 = vdwg.mxu0
        %v2005 = vmax.f32 %v2000, 0.0
        %v2006 = vpack.c.bf16 %v2005, %v2005
        %v2007 = vld [vmem:[%s837] sm:$0xf]
        %v2008 = vld [vmem:[%s837 + $0x4] sm:$0xf]
        %v2009 = vld [vmem:[%s837 + $0x8] sm:$0xf]
        %v2010 = vld [vmem:[%s837 + $0xc] sm:$0xf]
        %v2011 = vld [vmem:[%s837 + $0x10] sm:$0xf]
        %v2012 = vld [vmem:[%s837 + $0x14] sm:$0xf]
        %v2013 = vld [vmem:[%s837 + $0x18] sm:$0xf]
        %v2014 = vld [vmem:[%s837 + $0x1c] sm:$0xf]
        %v2015 = vld [vmem:[%s845] sm:$0x1]
        %v2017 = vlaneseq
        %v2018 = vshrl.u32 %v2017, 7
        %v2019 = vsub.s32 0, %v2018
        %v2020 = vrot.slane %v2015, %v2019
        %v2030 = vunpack.c.l.b16 %v2007
        %v2031 = vunpack.c.l.b16 %v2008
        %v2032 = vunpack.c.l.b16 %v2009
        %v2033 = vunpack.c.l.b16 %v2010
        %v2034 = vunpack.c.l.b16 %v2011
        %v2035 = vunpack.c.l.b16 %v2012
        %v2036 = vunpack.c.l.b16 %v2013
        %v2037 = vunpack.c.l.b16 %v2014
        %v2038 = vpack.c.b16 %v2031, %v2030
        %v2039 = vpack.c.b16 %v2033, %v2032
        %v2040 = vpack.c.b16 %v2035, %v2034
        %v2041 = vpack.c.b16 %v2037, %v2036
        %v2047 = vsel %vm1083, %v2006, 0
        %2049 = vmatprep.subr.bf16.mxu0 0
        %2050 = vmatpush1.bf16.msra.mxu0 %v2038
        %2051 = vmatprep.subr.bf16.mxu0 0
        %2052 = vmatpush1.bf16.msra.mxu0 %v2039
        %2053 = vmatprep.subr.bf16.mxu0 0
        %2054 = vmatpush1.bf16.msra.mxu0 %v2040
        %2055 = vmatprep.subr.bf16.mxu0 0
        %2056 = vmatpush1.bf16.msra.mxu0 %v2041
        %2057 = vmatprep.subr.bf16.mxu0 0
        %2058 = vmatpush1.bf16.msra.mxu0 0
        %2059 = vmatprep.subr.bf16.mxu0 0
        %2060 = vmatpush1.bf16.msra.mxu0 0
        %2061 = vmatprep.subr.bf16.mxu0 0
        %2062 = vmatpush1.bf16.msra.mxu0 0
        %2063 = vmatprep.subr.bf16.mxu0 0
        %2064 = vmatpush1.bf16.msra.mxu0 0
        %2065 = vmatprep.subr.bf16.mxu0 0
        %2066 = vmatpush1.bf16.msra.mxu0 0
        %2067 = vmatprep.subr.bf16.mxu0 0
        %2068 = vmatpush1.bf16.msra.mxu0 0
        %2069 = vmatprep.subr.bf16.mxu0 0
        %2070 = vmatpush1.bf16.msra.mxu0 0
        %2071 = vmatprep.subr.bf16.mxu0 0
        %2072 = vmatpush1.bf16.msra.mxu0 0
        %2073 = vmatprep.subr.bf16.mxu0 0
        %2074 = vmatpush1.bf16.msra.mxu0 0
        %2075 = vmatprep.subr.bf16.mxu0 0
        %2076 = vmatpush1.bf16.msra.mxu0 0
        %2077 = vmatprep.subr.bf16.mxu0 0
        %2078 = vmatpush1.bf16.msra.mxu0 0
        %2079 = vmatprep.subr.bf16.mxu0 0
        %2080 = vmatpush1.bf16.msra.mxu0 0
        %2081 = vmatprep.mubr.bf16.mxu0 0
        %2082 = vmatmul.mubr.bf16.gmra.mrb[0].mxu0 %v2047
        %v2083 = vpop.f32.mrb[0].mxu0
        %v2084 = vadd.f32 %v2020, %v2083
        %v2085 = vpop.f32.mrb[0].mxu0
        %v2086 = vpop.f32.mrb[0].mxu0
        %v2087 = vpop.f32.mrb[0].mxu0
        %2088 = vdwg.mxu0
        %v2089 = vadd.f32 %v1921, %v2084
        %v2090 = vld [vmem:[%s869] sm:$0x1]
        %v2091 = vld [vmem:[%s877] sm:$0x1]
        %v2092 = vsel %vm1083, %v2089, 0.0
        %2093 = vadd.xlane.f32.xlu0 %v2092
        %v2094 = vpop.xlane.xlu0 %2093
        %v2095 = vmul.f32 %v2094, %v1897
        %v2096 = vsub.f32 %v2089, %v2095
        %v2097 = vmul.f32 %v2096, %v2096
        %v2098 = vsel %vm1083, %v2097, 0.0
        %2099 = vadd.xlane.f32.xlu0 %v2098
        %v2100 = vpop.xlane.xlu0 %2099
        %v2101 = vmul.f32 %v2100, %v1897
        %v2102 = vadd.f32 %v2101, 1e-05
        %v2103 = vrsqrt.pop %v2102
        %v2104 = vmul.f32 %v2096, %v2103
        %v2106 = vlaneseq
        %v2107 = vshrl.u32 %v2106, 7
        %v2108 = vsub.s32 0, %v2107
        %v2109 = vrot.slane %v2090, %v2108
        %v2111 = vmul.f32 %v2104, %v2109
        %v2113 = vlaneseq
        %v2114 = vshrl.u32 %v2113, 7
        %v2115 = vsub.s32 0, %v2114
        %v2116 = vrot.slane %v2091, %v2115
        %v2118 = vadd.f32 %v2111, %v2116
        %2119 = vst.msk [vmem:[#allocation2] sm:$0xff] %vm1083, %v2118
        %p2120 = scmp.eq.s32.totalorder %s54, 1
        // Predicated region
        $region149: #{transformer_forward.1} parent=95 // pred_check
          %p2121 = pneg %p2120
        $region150: #{transformer_forward.1} parent=95 // pred_check_branch
          %2123 = sbr.rel (%p2121) target = $region152
        $region151: #{transformer_forward.1} parent=95 // pred_region
          %v2124 = vld [vmem:[%s13] sm:$0x1]
          %v2125 = vld [vmem:[#allocation18] sm:$0x1]
          %v2126 = vsel %vm1083, %v2118, 0.0
          %2127 = vadd.xlane.f32.xlu0 %v2126
          %v2128 = vpop.xlane.xlu0 %2127
          %v2129 = vmul.f32 %v2128, %v1897
          %v2130 = vsub.f32 %v2118, %v2129
          %v2131 = vmul.f32 %v2130, %v2130
          %v2132 = vsel %vm1083, %v2131, 0.0
          %2133 = vadd.xlane.f32.xlu0 %v2132
          %v2134 = vpop.xlane.xlu0 %2133
          %v2135 = vmul.f32 %v2134, %v1897
          %v2136 = vadd.f32 %v2135, 1e-05
          %v2137 = vrsqrt.pop %v2136
          %v2138 = vmul.f32 %v2130, %v2137
          %v2140 = vlaneseq
          %v2141 = vshrl.u32 %v2140, 7
          %v2142 = vsub.s32 0, %v2141
          %v2143 = vrot.slane %v2124, %v2142
          %v2145 = vmul.f32 %v2138, %v2143
          %v2147 = vlaneseq
          %v2148 = vshrl.u32 %v2147, 7
          %v2149 = vsub.s32 0, %v2148
          %v2150 = vrot.slane %v2125, %v2149
          %v2152 = vadd.f32 %v2145, %v2150
          %v2153 = vpack.c.bf16 %v2152, %v2152
          %v2154 = vld [vmem:[%s15] sm:$0xf]
          %v2155 = vld [vmem:[%s15 + $0x4] sm:$0xf]
          %v2156 = vld [vmem:[%s15 + $0x8] sm:$0xf]
          %v2157 = vld [vmem:[%s15 + $0xc] sm:$0xf]
          %v2158 = vld [vmem:[%s15 + $0x10] sm:$0xf]
          %v2159 = vld [vmem:[%s15 + $0x14] sm:$0xf]
          %v2160 = vld [vmem:[%s15 + $0x18] sm:$0xf]
          %v2161 = vld [vmem:[%s15 + $0x1c] sm:$0xf]
          %v2162 = vld [vmem:[#allocation20] sm:$0x1]
          %v2164 = vlaneseq
          %v2165 = vshrl.u32 %v2164, 7
          %v2166 = vsub.s32 0, %v2165
          %v2167 = vrot.slane %v2162, %v2166
          %v2177 = vunpack.c.l.b16 %v2154
          %v2178 = vunpack.c.l.b16 %v2155
          %v2179 = vunpack.c.l.b16 %v2156
          %v2180 = vunpack.c.l.b16 %v2157
          %v2181 = vunpack.c.l.b16 %v2158
          %v2182 = vunpack.c.l.b16 %v2159
          %v2183 = vunpack.c.l.b16 %v2160
          %v2184 = vunpack.c.l.b16 %v2161
          %v2185 = vpack.c.b16 %v2178, %v2177
          %v2186 = vpack.c.b16 %v2180, %v2179
          %v2187 = vpack.c.b16 %v2182, %v2181
          %v2188 = vpack.c.b16 %v2184, %v2183
          %v2194 = vsel %vm1083, %v2153, 0
          %2196 = vmatprep.subr.bf16.mxu0 0
          %2197 = vmatpush1.bf16.msra.mxu0 %v2185
          %2198 = vmatprep.subr.bf16.mxu0 0
          %2199 = vmatpush1.bf16.msra.mxu0 %v2186
          %2200 = vmatprep.subr.bf16.mxu0 0
          %2201 = vmatpush1.bf16.msra.mxu0 %v2187
          %2202 = vmatprep.subr.bf16.mxu0 0
          %2203 = vmatpush1.bf16.msra.mxu0 %v2188
          %2204 = vmatprep.subr.bf16.mxu0 0
          %2205 = vmatpush1.bf16.msra.mxu0 0
          %2206 = vmatprep.subr.bf16.mxu0 0
          %2207 = vmatpush1.bf16.msra.mxu0 0
          %2208 = vmatprep.subr.bf16.mxu0 0
          %2209 = vmatpush1.bf16.msra.mxu0 0
          %2210 = vmatprep.subr.bf16.mxu0 0
          %2211 = vmatpush1.bf16.msra.mxu0 0
          %2212 = vmatprep.subr.bf16.mxu0 0
          %2213 = vmatpush1.bf16.msra.mxu0 0
          %2214 = vmatprep.subr.bf16.mxu0 0
          %2215 = vmatpush1.bf16.msra.mxu0 0
          %2216 = vmatprep.subr.bf16.mxu0 0
          %2217 = vmatpush1.bf16.msra.mxu0 0
          %2218 = vmatprep.subr.bf16.mxu0 0
          %2219 = vmatpush1.bf16.msra.mxu0 0
          %2220 = vmatprep.subr.bf16.mxu0 0
          %2221 = vmatpush1.bf16.msra.mxu0 0
          %2222 = vmatprep.subr.bf16.mxu0 0
          %2223 = vmatpush1.bf16.msra.mxu0 0
          %2224 = vmatprep.subr.bf16.mxu0 0
          %2225 = vmatpush1.bf16.msra.mxu0 0
          %2226 = vmatprep.subr.bf16.mxu0 0
          %2227 = vmatpush1.bf16.msra.mxu0 0
          %2228 = vmatprep.mubr.bf16.mxu0 0
          %2229 = vmatmul.mubr.bf16.gmra.mrb[0].mxu0 %v2194
          %v2230 = vpop.f32.mrb[0].mxu0
          %v2231 = vadd.f32 %v2167, %v2230
          %v2232 = vpop.f32.mrb[0].mxu0
          %v2233 = vpop.f32.mrb[0].mxu0
          %v2234 = vpop.f32.mrb[0].mxu0
          %2235 = vdwg.mxu0
          %v2236 = vmax.f32 %v2231, 0.0
          %v2237 = vsel %vm1083, %v2236, 0.0
          %2238 = vadd.xlane.f32.xlu0 %v2237
          %v2239 = vpop.xlane.xlu0 %2238
          %v2240 = vmul.f32 %v2239, %v1897
          %v2241 = vsub.f32 %v2236, %v2240
          %v2242 = vmul.f32 %v2241, %v2241
          %v2243 = vsel %vm1083, %v2242, 0.0
          %2244 = vadd.xlane.f32.xlu0 %v2243
          %v2245 = vpop.xlane.xlu0 %2244
          %v2246 = vmul.f32 %v2245, %v1897
          %v2247 = vadd.f32 %v2246, 1e-05
          %v2248 = vrsqrt.pop %v2247
          %v2249 = vmul.f32 %v2241, %v2248
          %v2250 = vmul.f32 %v2249, %v2143
          %v2251 = vadd.f32 %v2250, %v2150
          %v2252 = vld [vmem:[#allocation21] sm:$0x1]
          %v2254 = vlaneseq
          %v2255 = vshrl.u32 %v2254, 7
          %v2256 = vsub.s32 0, %v2255
          %v2257 = vrot.slane %v2252, %v2256
          %v2259 = vmul.f32 %v2251, %v2257
          %v2260 = vsel %vm1083, %v2259, 0.0
          %2261 = vadd.xlane.f32.xlu0 %v2260
          %v2262 = vpop.xlane.xlu0 %2261
          %v2263 = vld [vmem:[#allocation3] sm:$0x1]
          %v2265 = vlaneseq
          %v2266 = vshrl.u32 %v2265, 7
          %v2267 = vsub.s32 0, %v2266
          %v2268 = vrot.slane %v2263, %v2267
          %v2270 = vadd.f32 %v2262, %v2268
          %v2271 = vxor.u32 %v2270, 2147483648
          %v2272 = vmul.f32 %v2271, 1.442695
          %v2273 = vpow.pop %v2272
          %v2274 = vadd.f32 %v2273, 1.0
          %v2275 = vrcp.pop %v2274
          %v2276 = vmul.f32 1.0, %v2275
          %vm2277 = vcmask 7168
          %2278 = vst.msk [vmem:[%s1012] sm:$0xff] %vm2277, %v2276
        $region152: #{transformer_forward.1} parent=95 // pred_fallthru
          _
        %p2279 = scmp.lt.s32.totalorder %s53, 1
        %s2280 = scalar_select %p2279, %s53, 1
        %s2281 = smul.addr %s2280, 8
        %s2282 = scalar_lea.vmem %s19, %s2281
        // Predicated region
        $region153: #{transformer_forward.1} parent=95 // pred_check
          %p2283 = pneg %p543
        $region154: #{transformer_forward.1} parent=95 // pred_check_branch
          %2285 = sbr.rel (%p2283) target = $region156
        $region155: #{transformer_forward.1} parent=95 // pred_region
          _
        $region156: #{transformer_forward.1} parent=95 // pred_fallthru
          _
      $region96: #{transformer_forward.1} parent=5 // pred_fallthru
        _
      %p2286 = scmp.le.s32.totalorder 2, %s44
      // Predicated region
      $region157: #{transformer_forward.1} parent=5 // pred_check
        %p2287 = pneg %p2286
      $region158: #{transformer_forward.1} parent=5 // pred_check_branch
        %2289 = sbr.rel (%p2287) target = $region160
      $region159: #{transformer_forward.1} parent=5 // pred_region
        %s2290 = ssub.s32 %s44, 2
        // Predicated region
        $region161: #{transformer_forward.1} parent=159 // pred_check
          %p2291 = pneg %p549
        $region162: #{transformer_forward.1} parent=159 // pred_check_branch
          %2293 = sbr.rel (%p2291) target = $region164
        $region163: #{transformer_forward.1} parent=159 // pred_region
          %p2294 = scmp.lt.s32.totalorder %s55, 1
          %s2295 = scalar_select %p2294, %s55, 1
          %s2296 = smul.addr %s2295, 8
          %s2297 = scalar_lea.vmem %s19, %s2296
        $region164: #{transformer_forward.1} parent=159 // pred_fallthru
          _
      $region160: #{transformer_forward.1} parent=5 // pred_fallthru
        _
    $region6: #{transformer_forward.1} parent=1 // loop_footer
      %s48 = sadd.s32 1, %s44
    $region7: #{transformer_forward.1} parent=1 // loop_footer_branch
      %43 = sbr.rel target = $region3
    $region8: #{transformer_forward.1} parent=1 // loop_exit
      _
    %2298 = vsyncpa [#allocation5], 1
    %s2299 = scalar_lea.sflag [#allocation5], 1
    %2300 = vsyncpa %s2299, 1
    %2301 = vsyncpa [#allocation7], 1
    %s2302 = scalar_lea.sflag [#allocation7], 1
    %2303 = vsyncpa %s2302, 1
    %2304 = vsyncpa [#allocation10], 1
    %s2305 = scalar_lea.sflag [#allocation10], 1
    %2306 = vsyncpa %s2305, 1
    %2307 = vsyncpa [#allocation13], 1
    %s2308 = scalar_lea.sflag [#allocation13], 1
    %2309 = vsyncpa %s2308, 1
    %2310 = vsyncpa [#allocation16], 1
    %s2311 = scalar_lea.sflag [#allocation16], 1
    %2312 = vsyncpa %s2311, 1
    %2313 = vsyncpa [#allocation19], 1
    %2314 = vsyncpa [#allocation22], 1

</llo_original>
